<compile_context>
chip_gen: v7x
topology: tpu7x:2x2x1
jax: 0.10.0
libtpu: 0.0.40
codegen_flags: <defaults>
</compile_context>

<pallas_src>
import functools

import jax
import jax.numpy as jnp
from jax.experimental import pallas as pl
from jax.experimental.pallas import tpu as pltpu

_LANE = 128
_NEG_INF = -1e30


def _round_up(v, m):
    return (v + m - 1) // m * m


def _vmem_capacity():
    """Device VMEM capacity in bytes (conservative 64 MiB fallback = v7x per-TC)."""
    try:
        return int(pltpu.get_tpu_info().vmem_capacity_bytes)
    except Exception:  # pragma: no cover - query unavailable
        return 64 << 20


def _pick_tb(batch, row_bytes, budget, sublane):
    """Largest batch tile (divisor of batch, multiple of `sublane`) fitting `budget`."""
    if batch * row_bytes <= budget:
        return batch                      # single grid step; weights fetched once anyway
    best = batch
    for cand in (2048, 1024, 512, 256, 128, 64, 32, 16):
        if cand < batch and batch % cand == 0 and cand % sublane == 0:
            best = cand                   # tracks the smallest legal divisor seen so far
            if cand * row_bytes <= budget:
                return cand               # largest divisor that fits
    return best


# --------------------------------------------------------------------------- kernels


def _gate_mlp(x_mm, gw1, gb1, gw2, gb2, gw3, gb3, matmul_dtype, approx_recip):
    """Dropout(id) -> Linear -> ReLU -> Linear -> ReLU -> Linear -> Softmax (f32 logits).

    Hidden dims are lane-padded with zero weight columns (exact through ReLU); the padded
    gate output columns carry a -1e30 bias so exp() underflows to exactly 0 in f32 and the
    softmax over the padded slab equals the softmax over the real experts.
    """
    h1 = jnp.dot(x_mm, gw1[...], preferred_element_type=jnp.float32) + gb1[...]
    h1 = jnp.maximum(h1, 0.0)
    h2 = jnp.dot(h1.astype(matmul_dtype), gw2[...],
                 preferred_element_type=jnp.float32) + gb2[...]
    h2 = jnp.maximum(h2, 0.0)
    logits = jnp.dot(h2.astype(matmul_dtype), gw3[...],
                     preferred_element_type=jnp.float32) + gb3[...]
    logits = logits - jnp.max(logits, axis=-1, keepdims=True)
    expl = jnp.exp(logits)
    denom = jnp.sum(expl, axis=-1, keepdims=True)
    if approx_recip:
        return expl * pl.reciprocal(denom, approx=True)
    return expl / denom


def _moe_fused_kernel(x_ref, gw1, gb1, gw2, gb2, gw3, gb3, ew, eb,
                      out_ref, gate_ref, *,
                      num_source, o_pad, matmul_dtype, approx_recip):
    x_mm = x_ref[...].astype(matmul_dtype)

    gate = _gate_mlp(x_mm, gw1, gb1, gw2, gb2, gw3, gb3, matmul_dtype, approx_recip)
    gate_ref[...] = gate.astype(gate_ref.dtype)

    # All experts in one wide lane-dense MXU matmul: ReLU(x @ W_all + b_all).
    eo = jnp.dot(x_mm, ew[...], preferred_element_type=jnp.float32) + eb[...]
    eo = jnp.maximum(eo, 0.0)                                   # [TB, E * O_pad] f32

    # Gated sum; accumulator initialized with the first expert (no wasted zeros pass).
    acc = gate[:, 0:1] * eo[:, :o_pad]
    for e in range(1, num_source):                              # small static unroll
        acc = acc + gate[:, e:e + 1] * eo[:, e * o_pad:(e + 1) * o_pad]
    out_ref[...] = acc.astype(out_ref.dtype)


def _moe_tiled_kernel(x_ref, gw1, gb1, gw2, gb2, gw3, gb3, ew, eb,
                      out_ref, gate_ref, gate_sc, acc_sc, *,
                      matmul_dtype, approx_recip):
    """Expert axis on the grid: one [D, O_pad] expert slab resident per step."""
    e = pl.program_id(1)
    x_mm = x_ref[...].astype(matmul_dtype)

    @pl.when(e == 0)
    def _():
        gate = _gate_mlp(x_mm, gw1, gb1, gw2, gb2, gw3, gb3, matmul_dtype, approx_recip)
        gate_ref[...] = gate.astype(gate_ref.dtype)
        gate_sc[...] = gate                                     # f32, reused for all e

    eo = jnp.dot(x_mm, ew[0], preferred_element_type=jnp.float32) + eb[0]
    eo = jnp.maximum(eo, 0.0)                                   # [TB, O_pad] f32

    # Per-row gate weight for expert e via lane-select + reduction (no dynamic lane slice).
    lane = jax.lax.broadcasted_iota(jnp.int32, gate_sc.shape, 1)
    ge = jnp.sum(jnp.where(lane == e, gate_sc[...], 0.0), axis=-1, keepdims=True)
    term = ge * eo

    @pl.when(e == 0)
    def _():
        acc_sc[...] = term                                      # init with first expert

    @pl.when(e > 0)
    def _():
        acc_sc[...] = acc_sc[...] + term

    @pl.when(e == pl.num_programs(1) - 1)
    def _():
        out_ref[...] = acc_sc[...].astype(out_ref.dtype)


# --------------------------------------------------------------------------- packing


def pack_params(params, *, matmul_dtype=jnp.bfloat16, tile_experts=None,
                lane_multiple=None):
    """One-time packing of raw MoE params (hoisted out of the forward pass).

    Pads all lane dims to 128 (or 256 for wide outputs on the 256-wide v6e/v7x MXU),
    pads the tiny gate hidden dims to full lanes (exact through ReLU), fuses the expert
    weights to [D, E*O_pad] for the fused path or keeps [E, D, O_pad] for the VMEM-bounded
    expert-tiled path, and casts the matmul operands to `matmul_dtype`.
    """
    gw1, gb1, gw2, gb2, gw3, gb3, ew, eb = params
    D, H1 = gw1.shape
    H2, E = gw3.shape
    O = ew.shape[-1]
    f32 = jnp.float32
    mm = matmul_dtype

    if lane_multiple is None:
        # 256-wide padding only pays off when the real output is at least that wide.
        lane_multiple = 256 if O >= 256 else _LANE
    o_pad = _round_up(O, lane_multiple)
    e_pad = _round_up(E, _LANE)
    h1_pad = _round_up(H1, _LANE)
    h2_pad = _round_up(H2, _LANE)

    # Gate MLP (zero-padded hidden lanes are exact through ReLU; padded gate logits get
    # a -1e30 bias so their softmax weight is exactly 0 in f32).
    gw1_p = jnp.pad(gw1, ((0, 0), (0, h1_pad - H1))).astype(mm)
    gb1_p = jnp.pad(gb1.astype(f32), ((0, 0), (0, h1_pad - H1)))
    gw2_p = jnp.pad(gw2, ((0, h1_pad - H1), (0, h2_pad - H2))).astype(mm)
    gb2_p = jnp.pad(gb2.astype(f32), ((0, 0), (0, h2_pad - H2)))
    gw3_p = jnp.pad(gw3, ((0, h2_pad - H2), (0, e_pad - E))).astype(mm)
    gb3_p = jnp.pad(gb3.astype(f32), ((0, 0), (0, e_pad - E)),
                    constant_values=_NEG_INF)

    ew_pad = jnp.pad(ew, ((0, 0), (0, 0), (0, o_pad - O)))       # [E, D, O_pad]
    eb_pad = jnp.pad(eb.astype(f32), ((0, 0), (0, 0), (0, o_pad - O)))

    gate_w_bytes = sum(int(a.size) * a.dtype.itemsize
                       for a in (gw1_p, gb1_p, gw2_p, gb2_p, gw3_p, gb3_p))
    exp_w_bytes = D * E * o_pad * jnp.dtype(mm).itemsize + E * o_pad * 4

    if tile_experts is None:
        # Keep the single wide fused matmul whenever (conservatively double-buffered)
        # weights leave at least half of VMEM for streamed activations; otherwise tile
        # the expert axis on the grid (required long before this point on v7x's 64 MiB).
        cap = _vmem_capacity()
        tile_experts = 2 * (gate_w_bytes + exp_w_bytes) > max(cap - (16 << 20), 1) // 2

    if tile_experts:
        ew_k = ew_pad.astype(mm)                                 # [E, D, O_pad]
        eb_k = eb_pad                                            # [E, 1, O_pad] f32
    else:
        ew_k = jnp.transpose(ew_pad, (1, 0, 2)).reshape(D, E * o_pad).astype(mm)
        eb_k = eb_pad.reshape(1, E * o_pad)                      # f32

    return dict(mode="tiled" if tile_experts else "fused",
                matmul_dtype=mm, num_source=E, output_size=O,
                o_pad=o_pad, e_pad=e_pad,
                gw1=gw1_p, gb1=gb1_p, gw2=gw2_p, gb2=gb2_p, gw3=gw3_p, gb3=gb3_p,
                ew=ew_k, eb=eb_k)


# --------------------------------------------------------------------------- wrapper


def mixture_of_experts(x, packed, *, tb=None, approx_recip=True):
    """Forward pass. Returns (output[B, O], gate[B, E]) like the PyTorch module."""
    B, D = x.shape
    mode = packed["mode"]
    mm = packed["matmul_dtype"]
    E = packed["num_source"]
    O = packed["output_size"]
    o_pad = packed["o_pad"]
    e_pad = packed["e_pad"]

    gw1, gb1, gw2, gb2, gw3, gb3 = (packed[k] for k in
                                    ("gw1", "gb1", "gw2", "gb2", "gw3", "gb3"))
    ew, eb = packed["ew"], packed["eb"]
    weights = (gw1, gb1, gw2, gb2, gw3, gb3, ew, eb)
    weight_bytes = sum(int(a.size) * a.dtype.itemsize for a in weights)
    assert gw1.shape[0] == D

    x_size = jnp.dtype(x.dtype).itemsize
    mm_size = jnp.dtype(mm).itemsize
    h1_pad, h2_pad = gw1.shape[1], gw2.shape[1]

    cap = _vmem_capacity()
    budget = max(cap - (8 << 20), 16 << 20)

    # Per-batch-row VMEM: double-buffered streamed tiles + f32 intermediates / scratch.
    stream_row = 2 * (D + o_pad + e_pad) * x_size
    gate_row = (h1_pad + h2_pad + 2 * e_pad) * 4 + D * mm_size
    if mode == "fused":
        inter_row = (E * o_pad + o_pad) * 4 + gate_row
    else:
        inter_row = (2 * o_pad + e_pad) * 4 + gate_row
    row_bytes = stream_row + inter_row

    # Activation budget assumes double-buffered weights (conservative; single buffering
    # is requested below, so this only makes tb slightly smaller than strictly needed).
    act_budget = max(budget - 2 * weight_bytes, 4 << 20)
    if tb is None:
        sub = max(8, 32 // x_size)                 # 8 for f32 inputs, 16 for bf16
        tb = _pick_tb(B, row_bytes, act_budget, sub)
    assert B % tb == 0

    vmem_limit = int(min(budget,
                         max(32 << 20, 2 * weight_bytes + tb * row_bytes + (8 << 20))))

    out_shape = (jax.ShapeDtypeStruct((B, o_pad), x.dtype),
                 jax.ShapeDtypeStruct((B, e_pad), x.dtype))

    if mode == "fused":
        kernel = functools.partial(_moe_fused_kernel, num_source=E, o_pad=o_pad,
                                   matmul_dtype=mm, approx_recip=approx_recip)
        grid = (B // tb,)
        dims = ("parallel",)
        x_spec = pl.BlockSpec((tb, D), lambda i: (i, 0))
        out_specs = [pl.BlockSpec((tb, o_pad), lambda i: (i, 0)),
                     pl.BlockSpec((tb, e_pad), lambda i: (i, 0))]
        scratch = ()

        def weight_specs(wmode):
            kw = {} if wmode is None else {"pipeline_mode": wmode}

            def const(shape):
                nd = len(shape)
                return pl.BlockSpec(shape, lambda i: (0,) * nd, **kw)

            return [const(a.shape) for a in weights]
    else:
        kernel = functools.partial(_moe_tiled_kernel, matmul_dtype=mm,
                                   approx_recip=approx_recip)
        grid = (B // tb, E)
        dims = ("parallel", "arbitrary")
        x_spec = pl.BlockSpec((tb, D), lambda i, e: (i, 0))
        out_specs = [pl.BlockSpec((tb, o_pad), lambda i, e: (i, 0)),
                     pl.BlockSpec((tb, e_pad), lambda i, e: (i, 0))]
        scratch = (pltpu.VMEM((tb, e_pad), jnp.float32),   # gate (reused across experts)
                   pltpu.VMEM((tb, o_pad), jnp.float32))   # f32 accumulator

        def weight_specs(wmode):
            kw = {} if wmode is None else {"pipeline_mode": wmode}

            def const(shape):
                nd = len(shape)
                return pl.BlockSpec(shape, lambda i, e: (0,) * nd, **kw)

            gate_specs = [const(a.shape) for a in (gw1, gb1, gw2, gb2, gw3, gb3)]
            # Per-expert slabs stream over the expert grid axis -> default double buffer
            # so the next expert's weights prefetch while the current one computes.
            return gate_specs + [pl.BlockSpec((1, D, o_pad), lambda i, e: (e, 0, 0)),
                                 pl.BlockSpec((1, 1, o_pad), lambda i, e: (e, 0, 0))]

    def run(wmode):
        return pl.pallas_call(
            kernel,
            out_shape=out_shape,
            grid_spec=pltpu.PrefetchScalarGridSpec(
                num_scalar_prefetch=0,
                grid=grid,
                in_specs=[x_spec] + weight_specs(wmode),
                out_specs=out_specs,
                scratch_shapes=scratch),
            compiler_params=pltpu.CompilerParams(
                dimension_semantics=dims,
                vmem_limit_bytes=vmem_limit),
        )(x, gw1, gb1, gw2, gb2, gw3, gb3, ew, eb)

    try:
        # Grid-invariant weights: request single buffering (halves their VMEM footprint).
        out_p, gate_p = run(pl.Buffered(1))
    except Exception:
        # Fallback for jax/Mosaic versions without single-buffered specs (identical math).
        out_p, gate_p = run(None)

    return out_p[:, :O], gate_p[:, :E]


# --------------------------------------------------------------------------- reference


def init_params(key, input_size, output_size, num_source, dtype=jnp.float32):
    """PyTorch nn.Linear-style uniform(-1/sqrt(fan_in), 1/sqrt(fan_in)) init."""
    H1, H2 = input_size // 4, input_size // 16

    def linear(k, fan_in, fan_out):
        kw, kb = jax.random.split(k)
        bound = 1.0 / jnp.sqrt(fan_in)
        w = jax.random.uniform(kw, (fan_in, fan_out), dtype, -bound, bound)
        b = jax.random.uniform(kb, (1, fan_out), dtype, -bound, bound)
        return w, b

    keys = jax.random.split(key, 3 + num_source)
    gw1, gb1 = linear(keys[0], input_size, H1)
    gw2, gb2 = linear(keys[1], H1, H2)
    gw3, gb3 = linear(keys[2], H2, num_source)
    ews, ebs = [], []
    for e in range(num_source):
        w, b = linear(keys[3 + e], input_size, output_size)
        ews.append(w)
        ebs.append(b)
    ew = jnp.stack(ews, axis=0)                    # [E, D, O]
    eb = jnp.stack(ebs, axis=0)                    # [E, 1, O]
    return (gw1, gb1, gw2, gb2, gw3, gb3, ew, eb)


def moe_reference(x, params, *, num_source):
    """Pure-JAX f32 reference mirroring the PyTorch forward."""
    gw1, gb1, gw2, gb2, gw3, gb3, ew, eb = params
    h1 = jax.nn.relu(x @ gw1 + gb1)
    h2 = jax.nn.relu(h1 @ gw2 + gb2)
    gate = jax.nn.softmax(h2 @ gw3 + gb3, axis=-1)
    expert_outs = jnp.stack(
        [jax.nn.relu(x @ ew[e] + eb[e]) for e in range(num_source)], axis=-2)
    out = jnp.sum(gate[..., None] * expert_outs, axis=-2)
    return out, gate


if __name__ == "__main__":
    batch = 32
    input_size = 64          # gate hidden sizes 16 and 4 (lane-padded at pack time)
    output_size = 32
    num_source = 4

    key = jax.random.PRNGKey(0)
    kx, kp = jax.random.split(key)
    x = jax.random.normal(kx, (batch, input_size), jnp.float32)
    params = init_params(kp, input_size, output_size, num_source)
    out_exp, gate_exp = moe_reference(x, params, num_source=num_source)

    # Packing is hoisted out of the forward pass: done ONCE here.
    packed_f32 = pack_params(params, matmul_dtype=jnp.float32, tile_experts=False)
    packed_bf16 = pack_params(params, matmul_dtype=jnp.bfloat16, tile_experts=False)
    packed_tiled = pack_params(params, matmul_dtype=jnp.bfloat16, tile_experts=True)

    out0, gate0 = mixture_of_experts(x, packed_f32)     # fused path, f32 matmuls
    out1, gate1 = mixture_of_experts(x, packed_bf16)    # fused path, bf16 matmuls
    out2, gate2 = mixture_of_experts(x, packed_tiled)   # expert-tiled (VMEM-bounded) path
    jax.block_until_ready((out0, gate0, out1, gate1, out2, gate2))

    for o, g in ((out0, gate0), (out1, gate1), (out2, gate2)):
        assert o.shape == (batch, output_size)
        assert g.shape == (batch, num_source)

    # f32 path: only the EUP approximate-reciprocal softmax denominator differs.
    assert jnp.allclose(gate0, gate_exp, atol=5e-3, rtol=5e-3)
    assert jnp.allclose(out0, out_exp, atol=5e-3, rtol=5e-3)
    # bf16-matmul paths: additional bf16 rounding on the MXU operands.
    for o, g in ((out1, gate1), (out2, gate2)):
        assert jnp.allclose(g, gate_exp, atol=2e-2, rtol=2e-2)
        assert jnp.allclose(o, out_exp, atol=2e-2, rtol=2e-2)

    print("KERNEL_OK")
</pallas_src>

<mosaic_0001>
module attributes {stable_mosaic.version = 11 : i64} {
  func.func @_moe_fused_kernel(%arg0: i32, %arg1: memref<32x64xf32, #tpu.memory_space<vmem>>, %arg2: memref<64x128xf32, #tpu.memory_space<vmem>>, %arg3: memref<1x128xf32, #tpu.memory_space<vmem>>, %arg4: memref<128x128xf32, #tpu.memory_space<vmem>>, %arg5: memref<1x128xf32, #tpu.memory_space<vmem>>, %arg6: memref<128x128xf32, #tpu.memory_space<vmem>>, %arg7: memref<1x128xf32, #tpu.memory_space<vmem>>, %arg8: memref<64x512xf32, #tpu.memory_space<vmem>>, %arg9: memref<1x512xf32, #tpu.memory_space<vmem>>, %arg10: memref<32x128xf32, #tpu.memory_space<vmem>>, %arg11: memref<32x128xf32, #tpu.memory_space<vmem>>) attributes {dimension_semantics = [#tpu.dimension_semantics<parallel>], iteration_bounds = array<i64: 1>, scalar_prefetch = 0 : i64, scratch_operands = 0 : i64, tpu.core_type = #tpu.core_type<tc>, window_params = [{transform_indices = @transform_0, window_bounds = array<i64: 32, 64>}, {pipeline_mode = #tpu.pipeline_mode<synchronous>, transform_indices = @transform_1, window_bounds = array<i64: 64, 128>}, {pipeline_mode = #tpu.pipeline_mode<synchronous>, transform_indices = @transform_2, window_bounds = array<i64: 1, 128>}, {pipeline_mode = #tpu.pipeline_mode<synchronous>, transform_indices = @transform_3, window_bounds = array<i64: 128, 128>}, {pipeline_mode = #tpu.pipeline_mode<synchronous>, transform_indices = @transform_4, window_bounds = array<i64: 1, 128>}, {pipeline_mode = #tpu.pipeline_mode<synchronous>, transform_indices = @transform_5, window_bounds = array<i64: 128, 128>}, {pipeline_mode = #tpu.pipeline_mode<synchronous>, transform_indices = @transform_6, window_bounds = array<i64: 1, 128>}, {pipeline_mode = #tpu.pipeline_mode<synchronous>, transform_indices = @transform_7, window_bounds = array<i64: 64, 512>}, {pipeline_mode = #tpu.pipeline_mode<synchronous>, transform_indices = @transform_8, window_bounds = array<i64: 1, 512>}, {transform_indices = @transform_9, window_bounds = array<i64: 32, 128>}, {transform_indices = @transform_10, window_bounds = array<i64: 32, 128>}]} {
    %c0 = arith.constant 0 : index
    %c0_0 = arith.constant 0 : index
    %0 = vector.load %arg1[%c0, %c0_0] : memref<32x64xf32, #tpu.memory_space<vmem>>, vector<32x64xf32>
    %c0_1 = arith.constant 0 : index
    %c0_2 = arith.constant 0 : index
    %1 = vector.load %arg2[%c0_1, %c0_2] : memref<64x128xf32, #tpu.memory_space<vmem>>, vector<64x128xf32>
    %cst = arith.constant dense<0.000000e+00> : vector<32x128xf32>
    %2 = tpu.matmul %0, %1, %cst {dimension_numbers = #tpu.dot_dimension_numbers<[1], [0], [0], [1], [0, 0, 1, 1], [], []>} : vector<32x64xf32>, vector<64x128xf32>, vector<32x128xf32> -> vector<32x128xf32>
    %c0_3 = arith.constant 0 : index
    %c0_4 = arith.constant 0 : index
    %3 = vector.load %arg3[%c0_3, %c0_4] : memref<1x128xf32, #tpu.memory_space<vmem>>, vector<1x128xf32>
    %4 = vector.broadcast %3 : vector<1x128xf32> to vector<32x128xf32>
    %5 = arith.addf %2, %4 : vector<32x128xf32>
    %cst_5 = arith.constant 0.000000e+00 : f32
    %6 = vector.broadcast %cst_5 : f32 to vector<32x128xf32>
    %7 = arith.maximumf %5, %6 : vector<32x128xf32>
    %c0_6 = arith.constant 0 : index
    %c0_7 = arith.constant 0 : index
    %8 = vector.load %arg4[%c0_6, %c0_7] : memref<128x128xf32, #tpu.memory_space<vmem>>, vector<128x128xf32>
    %cst_8 = arith.constant dense<0.000000e+00> : vector<32x128xf32>
    %9 = tpu.matmul %7, %8, %cst_8 {dimension_numbers = #tpu.dot_dimension_numbers<[1], [0], [0], [1], [0, 0, 1, 1], [], []>} : vector<32x128xf32>, vector<128x128xf32>, vector<32x128xf32> -> vector<32x128xf32>
    %c0_9 = arith.constant 0 : index
    %c0_10 = arith.constant 0 : index
    %10 = vector.load %arg5[%c0_9, %c0_10] : memref<1x128xf32, #tpu.memory_space<vmem>>, vector<1x128xf32>
    %11 = vector.broadcast %10 : vector<1x128xf32> to vector<32x128xf32>
    %12 = arith.addf %9, %11 : vector<32x128xf32>
    %cst_11 = arith.constant 0.000000e+00 : f32
    %13 = vector.broadcast %cst_11 : f32 to vector<32x128xf32>
    %14 = arith.maximumf %12, %13 : vector<32x128xf32>
    %c0_12 = arith.constant 0 : index
    %c0_13 = arith.constant 0 : index
    %15 = vector.load %arg6[%c0_12, %c0_13] : memref<128x128xf32, #tpu.memory_space<vmem>>, vector<128x128xf32>
    %cst_14 = arith.constant dense<0.000000e+00> : vector<32x128xf32>
    %16 = tpu.matmul %14, %15, %cst_14 {dimension_numbers = #tpu.dot_dimension_numbers<[1], [0], [0], [1], [0, 0, 1, 1], [], []>} : vector<32x128xf32>, vector<128x128xf32>, vector<32x128xf32> -> vector<32x128xf32>
    %c0_15 = arith.constant 0 : index
    %c0_16 = arith.constant 0 : index
    %17 = vector.load %arg7[%c0_15, %c0_16] : memref<1x128xf32, #tpu.memory_space<vmem>>, vector<1x128xf32>
    %18 = vector.broadcast %17 : vector<1x128xf32> to vector<32x128xf32>
    %19 = arith.addf %16, %18 : vector<32x128xf32>
    %cst_17 = arith.constant dense<0xFF800000> : vector<32xf32>
    %20 = vector.multi_reduction <maximumf>, %19, %cst_17 [1] : vector<32x128xf32> to vector<32xf32>
    %21 = vector.shape_cast %20 : vector<32xf32> to vector<32x1xf32>
    %22 = vector.broadcast %21 : vector<32x1xf32> to vector<32x128xf32>
    %23 = arith.subf %19, %22 : vector<32x128xf32>
    %24 = math.exp %23 : vector<32x128xf32>
    %cst_18 = arith.constant dense<0.000000e+00> : vector<32xf32>
    %25 = vector.multi_reduction <add>, %24, %cst_18 [1] : vector<32x128xf32> to vector<32xf32>
    %26 = vector.shape_cast %25 : vector<32xf32> to vector<32x1xf32>
    %27 = tpu.reciprocal %26 {approx = true} : vector<32x1xf32> -> vector<32x1xf32>
    %28 = vector.broadcast %27 : vector<32x1xf32> to vector<32x128xf32>
    %29 = arith.mulf %24, %28 : vector<32x128xf32>
    %c0_19 = arith.constant 0 : index
    %c0_20 = arith.constant 0 : index
    %30 = vector.load %arg11[%c0_19, %c0_20] : memref<32x128xf32, #tpu.memory_space<vmem>>, vector<32x128xf32>
    tpu.vector_store %arg11[%c0_19, %c0_20], %29 {strides = array<i32>} : memref<32x128xf32, #tpu.memory_space<vmem>>, vector<32x128xf32>,
    %c0_21 = arith.constant 0 : index
    %c0_22 = arith.constant 0 : index
    %31 = vector.load %arg8[%c0_21, %c0_22] : memref<64x512xf32, #tpu.memory_space<vmem>>, vector<64x512xf32>
    %cst_23 = arith.constant dense<0.000000e+00> : vector<32x512xf32>
    %32 = tpu.matmul %0, %31, %cst_23 {dimension_numbers = #tpu.dot_dimension_numbers<[1], [0], [0], [1], [0, 0, 1, 1], [], []>} : vector<32x64xf32>, vector<64x512xf32>, vector<32x512xf32> -> vector<32x512xf32>
    %c0_24 = arith.constant 0 : index
    %c0_25 = arith.constant 0 : index
    %33 = vector.load %arg9[%c0_24, %c0_25] : memref<1x512xf32, #tpu.memory_space<vmem>>, vector<1x512xf32>
    %34 = vector.broadcast %33 : vector<1x512xf32> to vector<32x512xf32>
    %35 = arith.addf %32, %34 : vector<32x512xf32>
    %cst_26 = arith.constant 0.000000e+00 : f32
    %36 = vector.broadcast %cst_26 : f32 to vector<32x512xf32>
    %37 = arith.maximumf %35, %36 : vector<32x512xf32>
    %38 = vector.extract_strided_slice %29 {offsets = [0, 0], sizes = [32, 1], strides = [1, 1]} : vector<32x128xf32> to vector<32x1xf32>
    %39 = vector.extract_strided_slice %37 {offsets = [0, 0], sizes = [32, 128], strides = [1, 1]} : vector<32x512xf32> to vector<32x128xf32>
    %40 = vector.broadcast %38 : vector<32x1xf32> to vector<32x128xf32>
    %41 = arith.mulf %40, %39 : vector<32x128xf32>
    %42 = vector.extract_strided_slice %29 {offsets = [0, 1], sizes = [32, 1], strides = [1, 1]} : vector<32x128xf32> to vector<32x1xf32>
    %43 = vector.extract_strided_slice %37 {offsets = [0, 128], sizes = [32, 128], strides = [1, 1]} : vector<32x512xf32> to vector<32x128xf32>
    %44 = vector.broadcast %42 : vector<32x1xf32> to vector<32x128xf32>
    %45 = arith.mulf %44, %43 : vector<32x128xf32>
    %46 = arith.addf %41, %45 : vector<32x128xf32>
    %47 = vector.extract_strided_slice %29 {offsets = [0, 2], sizes = [32, 1], strides = [1, 1]} : vector<32x128xf32> to vector<32x1xf32>
    %48 = vector.extract_strided_slice %37 {offsets = [0, 256], sizes = [32, 128], strides = [1, 1]} : vector<32x512xf32> to vector<32x128xf32>
    %49 = vector.broadcast %47 : vector<32x1xf32> to vector<32x128xf32>
    %50 = arith.mulf %49, %48 : vector<32x128xf32>
    %51 = arith.addf %46, %50 : vector<32x128xf32>
    %52 = vector.extract_strided_slice %29 {offsets = [0, 3], sizes = [32, 1], strides = [1, 1]} : vector<32x128xf32> to vector<32x1xf32>
    %53 = vector.extract_strided_slice %37 {offsets = [0, 384], sizes = [32, 128], strides = [1, 1]} : vector<32x512xf32> to vector<32x128xf32>
    %54 = vector.broadcast %52 : vector<32x1xf32> to vector<32x128xf32>
    %55 = arith.mulf %54, %53 : vector<32x128xf32>
    %56 = arith.addf %51, %55 : vector<32x128xf32>
    %c0_27 = arith.constant 0 : index
    %c0_28 = arith.constant 0 : index
    %57 = vector.load %arg10[%c0_27, %c0_28] : memref<32x128xf32, #tpu.memory_space<vmem>>, vector<32x128xf32>
    tpu.vector_store %arg10[%c0_27, %c0_28], %56 {strides = array<i32>} : memref<32x128xf32, #tpu.memory_space<vmem>>, vector<32x128xf32>,
    return
  }
  func.func @transform_0(%arg0: i32) -> (i32, i32) {
    %c0_i32 = arith.constant 0 : i32
    %c0_i32_0 = arith.constant 0 : i32
    return %arg0, %c0_i32 : i32, i32
  }
  func.func @transform_1(%arg0: i32) -> (i32, i32) {
    %c0_i32 = arith.constant 0 : i32
    %c0_i32_0 = arith.constant 0 : i32
    %c0_i32_1 = arith.constant 0 : i32
    return %c0_i32, %c0_i32_0 : i32, i32
  }
  func.func @transform_2(%arg0: i32) -> (i32, i32) {
    %c0_i32 = arith.constant 0 : i32
    %c0_i32_0 = arith.constant 0 : i32
    %c0_i32_1 = arith.constant 0 : i32
    return %c0_i32, %c0_i32_0 : i32, i32
  }
  func.func @transform_3(%arg0: i32) -> (i32, i32) {
    %c0_i32 = arith.constant 0 : i32
    %c0_i32_0 = arith.constant 0 : i32
    %c0_i32_1 = arith.constant 0 : i32
    return %c0_i32, %c0_i32_0 : i32, i32
  }
  func.func @transform_4(%arg0: i32) -> (i32, i32) {
    %c0_i32 = arith.constant 0 : i32
    %c0_i32_0 = arith.constant 0 : i32
    %c0_i32_1 = arith.constant 0 : i32
    return %c0_i32, %c0_i32_0 : i32, i32
  }
  func.func @transform_5(%arg0: i32) -> (i32, i32) {
    %c0_i32 = arith.constant 0 : i32
    %c0_i32_0 = arith.constant 0 : i32
    %c0_i32_1 = arith.constant 0 : i32
    return %c0_i32, %c0_i32_0 : i32, i32
  }
  func.func @transform_6(%arg0: i32) -> (i32, i32) {
    %c0_i32 = arith.constant 0 : i32
    %c0_i32_0 = arith.constant 0 : i32
    %c0_i32_1 = arith.constant 0 : i32
    return %c0_i32, %c0_i32_0 : i32, i32
  }
  func.func @transform_7(%arg0: i32) -> (i32, i32) {
    %c0_i32 = arith.constant 0 : i32
    %c0_i32_0 = arith.constant 0 : i32
    %c0_i32_1 = arith.constant 0 : i32
    return %c0_i32, %c0_i32_0 : i32, i32
  }
  func.func @transform_8(%arg0: i32) -> (i32, i32) {
    %c0_i32 = arith.constant 0 : i32
    %c0_i32_0 = arith.constant 0 : i32
    %c0_i32_1 = arith.constant 0 : i32
    return %c0_i32, %c0_i32_0 : i32, i32
  }
  func.func @transform_9(%arg0: i32) -> (i32, i32) {
    %c0_i32 = arith.constant 0 : i32
    %c0_i32_0 = arith.constant 0 : i32
    return %arg0, %c0_i32 : i32, i32
  }
  func.func @transform_10(%arg0: i32) -> (i32, i32) {
    %c0_i32 = arith.constant 0 : i32
    %c0_i32_0 = arith.constant 0 : i32
    return %arg0, %c0_i32 : i32, i32
  }
}

module attributes {stable_mosaic.version = 11 : i64} {
  func.func @_moe_fused_kernel(%arg0: i32, %arg1: memref<32x64xf32, #tpu.memory_space<vmem>>, %arg2: memref<64x128xf32, #tpu.memory_space<vmem>>, %arg3: memref<1x128xf32, #tpu.memory_space<vmem>>, %arg4: memref<128x128xf32, #tpu.memory_space<vmem>>, %arg5: memref<1x128xf32, #tpu.memory_space<vmem>>, %arg6: memref<128x128xf32, #tpu.memory_space<vmem>>, %arg7: memref<1x128xf32, #tpu.memory_space<vmem>>, %arg8: memref<64x512xf32, #tpu.memory_space<vmem>>, %arg9: memref<1x512xf32, #tpu.memory_space<vmem>>, %arg10: memref<32x128xf32, #tpu.memory_space<vmem>>, %arg11: memref<32x128xf32, #tpu.memory_space<vmem>>) attributes {dimension_semantics = [#tpu.dimension_semantics<parallel>], iteration_bounds = array<i64: 1>, scalar_prefetch = 0 : i64, scratch_operands = 0 : i64, tpu.core_type = #tpu.core_type<tc>, window_params = [{transform_indices = @transform_0, window_bounds = array<i64: 32, 64>}, {pipeline_mode = #tpu.pipeline_mode<synchronous>, transform_indices = @transform_1, window_bounds = array<i64: 64, 128>}, {pipeline_mode = #tpu.pipeline_mode<synchronous>, transform_indices = @transform_2, window_bounds = array<i64: 1, 128>}, {pipeline_mode = #tpu.pipeline_mode<synchronous>, transform_indices = @transform_3, window_bounds = array<i64: 128, 128>}, {pipeline_mode = #tpu.pipeline_mode<synchronous>, transform_indices = @transform_4, window_bounds = array<i64: 1, 128>}, {pipeline_mode = #tpu.pipeline_mode<synchronous>, transform_indices = @transform_5, window_bounds = array<i64: 128, 128>}, {pipeline_mode = #tpu.pipeline_mode<synchronous>, transform_indices = @transform_6, window_bounds = array<i64: 1, 128>}, {pipeline_mode = #tpu.pipeline_mode<synchronous>, transform_indices = @transform_7, window_bounds = array<i64: 64, 512>}, {pipeline_mode = #tpu.pipeline_mode<synchronous>, transform_indices = @transform_8, window_bounds = array<i64: 1, 512>}, {transform_indices = @transform_9, window_bounds = array<i64: 32, 128>}, {transform_indices = @transform_10, window_bounds = array<i64: 32, 128>}]} {
    %c0 = arith.constant 0 : index
    %c0_0 = arith.constant 0 : index
    %0 = vector.load %arg1[%c0, %c0_0] : memref<32x64xf32, #tpu.memory_space<vmem>>, vector<32x64xf32>
    %c0_1 = arith.constant 0 : index
    %c0_2 = arith.constant 0 : index
    %1 = vector.load %arg2[%c0_1, %c0_2] : memref<64x128xf32, #tpu.memory_space<vmem>>, vector<64x128xf32>
    %cst = arith.constant dense<0.000000e+00> : vector<32x128xf32>
    %2 = tpu.matmul %0, %1, %cst {dimension_numbers = #tpu.dot_dimension_numbers<[1], [0], [0], [1], [0, 0, 1, 1], [], []>} : vector<32x64xf32>, vector<64x128xf32>, vector<32x128xf32> -> vector<32x128xf32>
    %c0_3 = arith.constant 0 : index
    %c0_4 = arith.constant 0 : index
    %3 = vector.load %arg3[%c0_3, %c0_4] : memref<1x128xf32, #tpu.memory_space<vmem>>, vector<1x128xf32>
    %4 = vector.broadcast %3 : vector<1x128xf32> to vector<32x128xf32>
    %5 = arith.addf %2, %4 : vector<32x128xf32>
    %cst_5 = arith.constant 0.000000e+00 : f32
    %6 = vector.broadcast %cst_5 : f32 to vector<32x128xf32>
    %7 = arith.maximumf %5, %6 : vector<32x128xf32>
    %c0_6 = arith.constant 0 : index
    %c0_7 = arith.constant 0 : index
    %8 = vector.load %arg4[%c0_6, %c0_7] : memref<128x128xf32, #tpu.memory_space<vmem>>, vector<128x128xf32>
    %cst_8 = arith.constant dense<0.000000e+00> : vector<32x128xf32>
    %9 = tpu.matmul %7, %8, %cst_8 {dimension_numbers = #tpu.dot_dimension_numbers<[1], [0], [0], [1], [0, 0, 1, 1], [], []>} : vector<32x128xf32>, vector<128x128xf32>, vector<32x128xf32> -> vector<32x128xf32>
    %c0_9 = arith.constant 0 : index
    %c0_10 = arith.constant 0 : index
    %10 = vector.load %arg5[%c0_9, %c0_10] : memref<1x128xf32, #tpu.memory_space<vmem>>, vector<1x128xf32>
    %11 = vector.broadcast %10 : vector<1x128xf32> to vector<32x128xf32>
    %12 = arith.addf %9, %11 : vector<32x128xf32>
    %cst_11 = arith.constant 0.000000e+00 : f32
    %13 = vector.broadcast %cst_11 : f32 to vector<32x128xf32>
    %14 = arith.maximumf %12, %13 : vector<32x128xf32>
    %c0_12 = arith.constant 0 : index
    %c0_13 = arith.constant 0 : index
    %15 = vector.load %arg6[%c0_12, %c0_13] : memref<128x128xf32, #tpu.memory_space<vmem>>, vector<128x128xf32>
    %cst_14 = arith.constant dense<0.000000e+00> : vector<32x128xf32>
    %16 = tpu.matmul %14, %15, %cst_14 {dimension_numbers = #tpu.dot_dimension_numbers<[1], [0], [0], [1], [0, 0, 1, 1], [], []>} : vector<32x128xf32>, vector<128x128xf32>, vector<32x128xf32> -> vector<32x128xf32>
    %c0_15 = arith.constant 0 : index
    %c0_16 = arith.constant 0 : index
    %17 = vector.load %arg7[%c0_15, %c0_16] : memref<1x128xf32, #tpu.memory_space<vmem>>, vector<1x128xf32>
    %18 = vector.broadcast %17 : vector<1x128xf32> to vector<32x128xf32>
    %19 = arith.addf %16, %18 : vector<32x128xf32>
    %cst_17 = arith.constant dense<0xFF800000> : vector<32xf32>
    %20 = vector.multi_reduction <maximumf>, %19, %cst_17 [1] : vector<32x128xf32> to vector<32xf32>
    %21 = vector.shape_cast %20 : vector<32xf32> to vector<32x1xf32>
    %22 = vector.broadcast %21 : vector<32x1xf32> to vector<32x128xf32>
    %23 = arith.subf %19, %22 : vector<32x128xf32>
    %24 = math.exp %23 : vector<32x128xf32>
    %cst_18 = arith.constant dense<0.000000e+00> : vector<32xf32>
    %25 = vector.multi_reduction <add>, %24, %cst_18 [1] : vector<32x128xf32> to vector<32xf32>
    %26 = vector.shape_cast %25 : vector<32xf32> to vector<32x1xf32>
    %27 = tpu.reciprocal %26 {approx = true} : vector<32x1xf32> -> vector<32x1xf32>
    %28 = vector.broadcast %27 : vector<32x1xf32> to vector<32x128xf32>
    %29 = arith.mulf %24, %28 : vector<32x128xf32>
    %c0_19 = arith.constant 0 : index
    %c0_20 = arith.constant 0 : index
    %30 = vector.load %arg11[%c0_19, %c0_20] : memref<32x128xf32, #tpu.memory_space<vmem>>, vector<32x128xf32>
    tpu.vector_store %arg11[%c0_19, %c0_20], %29 {strides = array<i32>} : memref<32x128xf32, #tpu.memory_space<vmem>>, vector<32x128xf32>,
    %c0_21 = arith.constant 0 : index
    %c0_22 = arith.constant 0 : index
    %31 = vector.load %arg8[%c0_21, %c0_22] : memref<64x512xf32, #tpu.memory_space<vmem>>, vector<64x512xf32>
    %cst_23 = arith.constant dense<0.000000e+00> : vector<32x512xf32>
    %32 = tpu.matmul %0, %31, %cst_23 {dimension_numbers = #tpu.dot_dimension_numbers<[1], [0], [0], [1], [0, 0, 1, 1], [], []>} : vector<32x64xf32>, vector<64x512xf32>, vector<32x512xf32> -> vector<32x512xf32>
    %c0_24 = arith.constant 0 : index
    %c0_25 = arith.constant 0 : index
    %33 = vector.load %arg9[%c0_24, %c0_25] : memref<1x512xf32, #tpu.memory_space<vmem>>, vector<1x512xf32>
    %34 = vector.broadcast %33 : vector<1x512xf32> to vector<32x512xf32>
    %35 = arith.addf %32, %34 : vector<32x512xf32>
    %cst_26 = arith.constant 0.000000e+00 : f32
    %36 = vector.broadcast %cst_26 : f32 to vector<32x512xf32>
    %37 = arith.maximumf %35, %36 : vector<32x512xf32>
    %38 = vector.extract_strided_slice %29 {offsets = [0, 0], sizes = [32, 1], strides = [1, 1]} : vector<32x128xf32> to vector<32x1xf32>
    %39 = vector.extract_strided_slice %37 {offsets = [0, 0], sizes = [32, 128], strides = [1, 1]} : vector<32x512xf32> to vector<32x128xf32>
    %40 = vector.broadcast %38 : vector<32x1xf32> to vector<32x128xf32>
    %41 = arith.mulf %40, %39 : vector<32x128xf32>
    %42 = vector.extract_strided_slice %29 {offsets = [0, 1], sizes = [32, 1], strides = [1, 1]} : vector<32x128xf32> to vector<32x1xf32>
    %43 = vector.extract_strided_slice %37 {offsets = [0, 128], sizes = [32, 128], strides = [1, 1]} : vector<32x512xf32> to vector<32x128xf32>
    %44 = vector.broadcast %42 : vector<32x1xf32> to vector<32x128xf32>
    %45 = arith.mulf %44, %43 : vector<32x128xf32>
    %46 = arith.addf %41, %45 : vector<32x128xf32>
    %47 = vector.extract_strided_slice %29 {offsets = [0, 2], sizes = [32, 1], strides = [1, 1]} : vector<32x128xf32> to vector<32x1xf32>
    %48 = vector.extract_strided_slice %37 {offsets = [0, 256], sizes = [32, 128], strides = [1, 1]} : vector<32x512xf32> to vector<32x128xf32>
    %49 = vector.broadcast %47 : vector<32x1xf32> to vector<32x128xf32>
    %50 = arith.mulf %49, %48 : vector<32x128xf32>
    %51 = arith.addf %46, %50 : vector<32x128xf32>
    %52 = vector.extract_strided_slice %29 {offsets = [0, 3], sizes = [32, 1], strides = [1, 1]} : vector<32x128xf32> to vector<32x1xf32>
    %53 = vector.extract_strided_slice %37 {offsets = [0, 384], sizes = [32, 128], strides = [1, 1]} : vector<32x512xf32> to vector<32x128xf32>
    %54 = vector.broadcast %52 : vector<32x1xf32> to vector<32x128xf32>
    %55 = arith.mulf %54, %53 : vector<32x128xf32>
    %56 = arith.addf %51, %55 : vector<32x128xf32>
    %c0_27 = arith.constant 0 : index
    %c0_28 = arith.constant 0 : index
    %57 = vector.load %arg10[%c0_27, %c0_28] : memref<32x128xf32, #tpu.memory_space<vmem>>, vector<32x128xf32>
    tpu.vector_store %arg10[%c0_27, %c0_28], %56 {strides = array<i32>} : memref<32x128xf32, #tpu.memory_space<vmem>>, vector<32x128xf32>,
    return
  }
  func.func @transform_0(%arg0: i32) -> (i32, i32) {
    %c0_i32 = arith.constant 0 : i32
    %c0_i32_0 = arith.constant 0 : i32
    return %arg0, %c0_i32 : i32, i32
  }
  func.func @transform_1(%arg0: i32) -> (i32, i32) {
    %c0_i32 = arith.constant 0 : i32
    %c0_i32_0 = arith.constant 0 : i32
    %c0_i32_1 = arith.constant 0 : i32
    return %c0_i32, %c0_i32_0 : i32, i32
  }
  func.func @transform_2(%arg0: i32) -> (i32, i32) {
    %c0_i32 = arith.constant 0 : i32
    %c0_i32_0 = arith.constant 0 : i32
    %c0_i32_1 = arith.constant 0 : i32
    return %c0_i32, %c0_i32_0 : i32, i32
  }
  func.func @transform_3(%arg0: i32) -> (i32, i32) {
    %c0_i32 = arith.constant 0 : i32
    %c0_i32_0 = arith.constant 0 : i32
    %c0_i32_1 = arith.constant 0 : i32
    return %c0_i32, %c0_i32_0 : i32, i32
  }
  func.func @transform_4(%arg0: i32) -> (i32, i32) {
    %c0_i32 = arith.constant 0 : i32
    %c0_i32_0 = arith.constant 0 : i32
    %c0_i32_1 = arith.constant 0 : i32
    return %c0_i32, %c0_i32_0 : i32, i32
  }
  func.func @transform_5(%arg0: i32) -> (i32, i32) {
    %c0_i32 = arith.constant 0 : i32
    %c0_i32_0 = arith.constant 0 : i32
    %c0_i32_1 = arith.constant 0 : i32
    return %c0_i32, %c0_i32_0 : i32, i32
  }
  func.func @transform_6(%arg0: i32) -> (i32, i32) {
    %c0_i32 = arith.constant 0 : i32
    %c0_i32_0 = arith.constant 0 : i32
    %c0_i32_1 = arith.constant 0 : i32
    return %c0_i32, %c0_i32_0 : i32, i32
  }
  func.func @transform_7(%arg0: i32) -> (i32, i32) {
    %c0_i32 = arith.constant 0 : i32
    %c0_i32_0 = arith.constant 0 : i32
    %c0_i32_1 = arith.constant 0 : i32
    return %c0_i32, %c0_i32_0 : i32, i32
  }
  func.func @transform_8(%arg0: i32) -> (i32, i32) {
    %c0_i32 = arith.constant 0 : i32
    %c0_i32_0 = arith.constant 0 : i32
    %c0_i32_1 = arith.constant 0 : i32
    return %c0_i32, %c0_i32_0 : i32, i32
  }
  func.func @transform_9(%arg0: i32) -> (i32, i32) {
    %c0_i32 = arith.constant 0 : i32
    %c0_i32_0 = arith.constant 0 : i32
    return %arg0, %c0_i32 : i32, i32
  }
  func.func @transform_10(%arg0: i32) -> (i32, i32) {
    %c0_i32 = arith.constant 0 : i32
    %c0_i32_0 = arith.constant 0 : i32
    return %arg0, %c0_i32 : i32, i32
  }
}

</mosaic_0001>

<llo_original>
// kernel: tpu_custom_call.1
$region0: #{tpu_custom_call.1}
  #allocation0 [shape = 'u32[]', space=smem, size = 0x4, offset = 0x4, fixed_abs, tag = 'smem constant byte address 0x4 - core index']
  #allocation1 [shape = 'u32[144,128]{1,0:T(1,128)}', space=vmem, size = 0x12000, scoped, tag = 'internal scratch']
  %s0 = inlined_call_operand.hbm [shape: f32[32,64], index: 0, kind: input, shape index: {}]
  %s1 = inlined_call_operand.hbm [shape: f32[64,128], index: 1, kind: input, shape index: {}]
  %s2 = inlined_call_operand.vmem [shape: f32[1,128], index: 2, kind: input, shape index: {}]
  %s3 = inlined_call_operand.hbm [shape: f32[128,128], index: 3, kind: input, shape index: {}]
  %s4 = inlined_call_operand.vmem [shape: f32[1,128], index: 4, kind: input, shape index: {}]
  %s5 = inlined_call_operand.hbm [shape: f32[128,128], index: 5, kind: input, shape index: {}]
  %s6 = inlined_call_operand.vmem [shape: f32[1,128], index: 6, kind: input, shape index: {}]
  %s7 = inlined_call_operand.hbm [shape: f32[64,512], index: 7, kind: input, shape index: {}]
  %s8 = inlined_call_operand.vmem [shape: f32[1,512], index: 8, kind: input, shape index: {}]
  %s9 = inlined_call_operand.hbm [shape: f32[32,128], index: 9, kind: output, shape index: {0}]
  %s10 = inlined_call_operand.hbm [shape: f32[32,128], index: 10, kind: output, shape index: {1}]
  %11 = xla_tuple %s9, %s10
  %s12 = sld [smem:[#allocation0]]
  $region74: #{tpu_custom_call.1} parent=0
    _
  %s14 = ssub.s32 1, %s12
  %s15 = scalar_select 0, %s14, %s12
  $region1: #{tpu_custom_call.1} parent=0
    #allocation2 [shape = 'u8[16384]{0}', space=vmem, size = 0x4000, scoped, tag = 'input window, operand 0, single buffered']
    #allocation3 [shape = 's32[1]{0}', space=sflag, size = 0x4, scoped, tag = 'scoped memory for tpu_custom_call.1']
    #allocation4 [shape = 's32[1]{0}', space=sflag, size = 0x4, scoped, tag = 'scoped memory for tpu_custom_call.1']
    #allocation5 [shape = 'u8[32768]{0}', space=vmem, size = 0x8000, scoped, tag = 'input window, operand 1, single buffered']
    #allocation6 [shape = 's32[1]{0}', space=sflag, size = 0x4, scoped, tag = 'scoped memory for tpu_custom_call.1']
    #allocation7 [shape = 'u8[65536]{0}', space=vmem, size = 0x10000, scoped, tag = 'input window, operand 3, single buffered']
    #allocation8 [shape = 'u8[65536]{0}', space=vmem, size = 0x10000, scoped, tag = 'input window, operand 5, single buffered']
    #allocation9 [shape = 's32[1]{0}', space=sflag, size = 0x4, scoped, tag = 'scoped memory for tpu_custom_call.1']
    #allocation10 [shape = 'u8[131072]{0}', space=vmem, size = 0x20000, scoped, tag = 'input window, operand 7, single buffered']
    #allocation11 [shape = 'u8[16384]{0}', space=vmem, size = 0x4000, scoped, tag = 'output window, operand 0, single buffered']
    #allocation12 [shape = 'u8[16384]{0}', space=vmem, size = 0x4000, scoped, tag = 'output window, operand 1, single buffered']
    #allocation13 [shape = 's32[1]{0}', space=sflag, size = 0x4, scoped, tag = 'scoped memory for tpu_custom_call.1']
    %16 = vsyncpa [#allocation3], 0
    %17 = vsyncpa [#allocation6], 0
    %18 = vsyncpa [#allocation9], 0
    %19 = vsyncpa [#allocation4], 0
    %20 = vsyncpa [#allocation13], 0
    // Predicated region
    $region2: #{tpu_custom_call.1} parent=1 // pred_check
      _
    $region3: #{tpu_custom_call.1} parent=1 // pred_check_branch
      %22 = sbr.rel (0) target = $region5
    $region4: #{tpu_custom_call.1} parent=1 // pred_region
      %s24 = ssub.s32 512, 512
      %25 = vsyncadd [#allocation3], %s24
      %s26 = sshll.u32 [#allocation2], 4
      %s27 = int_to_ptr.vmem [resolvable:$true] %s26
      %32 = dma.hbm_to_vmem [thread:$0]  %s0, 512, %s27, [#allocation3], 128, 128, 8
    $region5: #{tpu_custom_call.1} parent=1 // pred_fallthru
      _
    // Predicated region
    $region6: #{tpu_custom_call.1} parent=1 // pred_check
      _
    $region7: #{tpu_custom_call.1} parent=1 // pred_check_branch
      %34 = sbr.rel (0) target = $region9
    $region8: #{tpu_custom_call.1} parent=1 // pred_region
      %s36 = ssub.s32 1024, 1024
      %37 = vsyncadd [#allocation6], %s36
      %s38 = sshll.u32 [#allocation5], 4
      %s39 = int_to_ptr.vmem [resolvable:$true] %s38
      %44 = dma.hbm_to_vmem [thread:$0]  %s1, 1024, %s39, [#allocation6], 128, 128, 8
    $region9: #{tpu_custom_call.1} parent=1 // pred_fallthru
      _
    // Predicated region
    $region10: #{tpu_custom_call.1} parent=1 // pred_check
      _
    $region11: #{tpu_custom_call.1} parent=1 // pred_check_branch
      %46 = sbr.rel (0) target = $region13
    $region12: #{tpu_custom_call.1} parent=1 // pred_region
      _
    $region13: #{tpu_custom_call.1} parent=1 // pred_fallthru
      _
    // Predicated region
    $region14: #{tpu_custom_call.1} parent=1 // pred_check
      _
    $region15: #{tpu_custom_call.1} parent=1 // pred_check_branch
      %48 = sbr.rel (0) target = $region17
    $region16: #{tpu_custom_call.1} parent=1 // pred_region
      %s50 = ssub.s32 2048, 2048
      %51 = vsyncadd [#allocation6], %s50
      %s52 = sshll.u32 [#allocation7], 4
      %s53 = int_to_ptr.vmem [resolvable:$true] %s52
      %58 = dma.hbm_to_vmem [thread:$0]  %s3, 2048, %s53, [#allocation6], 128, 128, 8
    $region17: #{tpu_custom_call.1} parent=1 // pred_fallthru
      _
    // Predicated region
    $region18: #{tpu_custom_call.1} parent=1 // pred_check
      _
    $region19: #{tpu_custom_call.1} parent=1 // pred_check_branch
      %60 = sbr.rel (0) target = $region21
    $region20: #{tpu_custom_call.1} parent=1 // pred_region
      _
    $region21: #{tpu_custom_call.1} parent=1 // pred_fallthru
      _
    // Predicated region
    $region22: #{tpu_custom_call.1} parent=1 // pred_check
      _
    $region23: #{tpu_custom_call.1} parent=1 // pred_check_branch
      %62 = sbr.rel (0) target = $region25
    $region24: #{tpu_custom_call.1} parent=1 // pred_region
      %s64 = ssub.s32 2048, 2048
      %65 = vsyncadd [#allocation9], %s64
      %s66 = sshll.u32 [#allocation8], 4
      %s67 = int_to_ptr.vmem [resolvable:$true] %s66
      %72 = dma.hbm_to_vmem [thread:$0]  %s5, 2048, %s67, [#allocation9], 128, 128, 8
    $region25: #{tpu_custom_call.1} parent=1 // pred_fallthru
      _
    // Predicated region
    $region26: #{tpu_custom_call.1} parent=1 // pred_check
      _
    $region27: #{tpu_custom_call.1} parent=1 // pred_check_branch
      %74 = sbr.rel (0) target = $region29
    $region28: #{tpu_custom_call.1} parent=1 // pred_region
      _
    $region29: #{tpu_custom_call.1} parent=1 // pred_fallthru
      _
    // Predicated region
    $region30: #{tpu_custom_call.1} parent=1 // pred_check
      _
    $region31: #{tpu_custom_call.1} parent=1 // pred_check_branch
      %76 = sbr.rel (0) target = $region33
    $region32: #{tpu_custom_call.1} parent=1 // pred_region
      %s78 = ssub.s32 4096, 4096
      %79 = vsyncadd [#allocation9], %s78
      %s80 = sshll.u32 [#allocation10], 4
      %s81 = int_to_ptr.vmem [resolvable:$true] %s80
      %86 = dma.hbm_to_vmem [thread:$0]  %s7, 4096, %s81, [#allocation9], 512, 512, 32
    $region33: #{tpu_custom_call.1} parent=1 // pred_fallthru
      _
    // Predicated region
    $region34: #{tpu_custom_call.1} parent=1 // pred_check
      _
    $region35: #{tpu_custom_call.1} parent=1 // pred_check_branch
      %88 = sbr.rel (0) target = $region37
    $region36: #{tpu_custom_call.1} parent=1 // pred_region
      _
    $region37: #{tpu_custom_call.1} parent=1 // pred_fallthru
      _
    // Predicated region
    $region38: #{tpu_custom_call.1} parent=1 // pred_check
      _
    $region39: #{tpu_custom_call.1} parent=1 // pred_check_branch
      %90 = sbr.rel (0) target = $region41
    $region40: #{tpu_custom_call.1} parent=1 // pred_region
      %91 = dma.done [#allocation3], 512
    $region41: #{tpu_custom_call.1} parent=1 // pred_fallthru
      _
    // Predicated region
    $region42: #{tpu_custom_call.1} parent=1 // pred_check
      _
    $region43: #{tpu_custom_call.1} parent=1 // pred_check_branch
      %93 = sbr.rel (0) target = $region45
    $region44: #{tpu_custom_call.1} parent=1 // pred_region
      %94 = dma.done [#allocation6], 1024
    $region45: #{tpu_custom_call.1} parent=1 // pred_fallthru
      _
    // Predicated region
    $region46: #{tpu_custom_call.1} parent=1 // pred_check
      _
    $region47: #{tpu_custom_call.1} parent=1 // pred_check_branch
      %96 = sbr.rel (0) target = $region49
    $region48: #{tpu_custom_call.1} parent=1 // pred_region
      %97 = dma.done [#allocation6], 2048
    $region49: #{tpu_custom_call.1} parent=1 // pred_fallthru
      _
    // Predicated region
    $region50: #{tpu_custom_call.1} parent=1 // pred_check
      _
    $region51: #{tpu_custom_call.1} parent=1 // pred_check_branch
      %99 = sbr.rel (0) target = $region53
    $region52: #{tpu_custom_call.1} parent=1 // pred_region
      %100 = dma.done [#allocation9], 2048
    $region53: #{tpu_custom_call.1} parent=1 // pred_fallthru
      _
    // Predicated region
    $region54: #{tpu_custom_call.1} parent=1 // pred_check
      _
    $region55: #{tpu_custom_call.1} parent=1 // pred_check_branch
      %102 = sbr.rel (0) target = $region57
    $region56: #{tpu_custom_call.1} parent=1 // pred_region
      %103 = dma.done [#allocation9], 4096
    $region57: #{tpu_custom_call.1} parent=1 // pred_fallthru
      _
    %v104 = vld [vmem:[#allocation2] sm:$0xff]
    %v105 = vld [vmem:[#allocation2 + $0x8] sm:$0xff]
    %v106 = vld [vmem:[#allocation2 + $0x10] sm:$0xff]
    %v107 = vld [vmem:[#allocation2 + $0x18] sm:$0xff]
    %v108 = vld [vmem:[#allocation5] sm:$0xff]
    %v109 = vld [vmem:[#allocation5 + $0x8] sm:$0xff]
    %v110 = vld [vmem:[#allocation5 + $0x10] sm:$0xff]
    %v111 = vld [vmem:[#allocation5 + $0x18] sm:$0xff]
    %v112 = vld [vmem:[#allocation5 + $0x20] sm:$0xff]
    %v113 = vld [vmem:[#allocation5 + $0x28] sm:$0xff]
    %v114 = vld [vmem:[#allocation5 + $0x30] sm:$0xff]
    %v115 = vld [vmem:[#allocation5 + $0x38] sm:$0xff]
    %v116 = vld [vmem:[%s2] sm:$0x1]
    %v118 = vlaneseq
    %v119 = vshrl.u32 %v118, 7
    %v120 = vsub.s32 0, %v119
    %v121 = vrot.slane %v116, %v120
    %vm123 = vcmask 523264
    %v125 = vsel %vm123, %v104, 0
    %v128 = vsel %vm123, %v105, 0
    %v131 = vsel %vm123, %v106, 0
    %v134 = vsel %vm123, %v107, 0
    %136 = vmatprep.subr.mxu0 0.0
    %137 = vmatpush1.msra.mxu0 %v108
    %138 = vmatprep.subr.mxu0 0.0
    %139 = vmatpush1.msra.mxu0 %v109
    %140 = vmatprep.subr.mxu0 0.0
    %141 = vmatpush1.msra.mxu0 %v110
    %142 = vmatprep.subr.mxu0 0.0
    %143 = vmatpush1.msra.mxu0 %v111
    %144 = vmatprep.subr.mxu0 0.0
    %145 = vmatpush1.msra.mxu0 %v112
    %146 = vmatprep.subr.mxu0 0.0
    %147 = vmatpush1.msra.mxu0 %v113
    %148 = vmatprep.subr.mxu0 0.0
    %149 = vmatpush1.msra.mxu0 %v114
    %150 = vmatprep.subr.mxu0 0.0
    %151 = vmatpush1.msra.mxu0 %v115
    %152 = vmatprep.subr.mxu0 0.0
    %153 = vmatpush1.msra.mxu0 0.0
    %154 = vmatprep.subr.mxu0 0.0
    %155 = vmatpush1.msra.mxu0 0.0
    %156 = vmatprep.subr.mxu0 0.0
    %157 = vmatpush1.msra.mxu0 0.0
    %158 = vmatprep.subr.mxu0 0.0
    %159 = vmatpush1.msra.mxu0 0.0
    %160 = vmatprep.subr.mxu0 0.0
    %161 = vmatpush1.msra.mxu0 0.0
    %162 = vmatprep.subr.mxu0 0.0
    %163 = vmatpush1.msra.mxu0 0.0
    %164 = vmatprep.subr.mxu0 0.0
    %165 = vmatpush1.msra.mxu0 0.0
    %166 = vmatprep.subr.mxu0 0.0
    %167 = vmatpush1.msra.mxu0 0.0
    %168 = vmatprep.subr.mxu0 0.0
    %169 = vmatpush1.msra.mxu0 0.0
    %170 = vmatprep.subr.mxu0 0.0
    %171 = vmatpush1.msra.mxu0 0.0
    %172 = vmatprep.subr.mxu0 0.0
    %173 = vmatpush1.msra.mxu0 0.0
    %174 = vmatprep.subr.mxu0 0.0
    %175 = vmatpush1.msra.mxu0 0.0
    %176 = vmatprep.subr.mxu0 0.0
    %177 = vmatpush1.msra.mxu0 0.0
    %178 = vmatprep.subr.mxu0 0.0
    %179 = vmatpush1.msra.mxu0 0.0
    %180 = vmatprep.subr.mxu0 0.0
    %181 = vmatpush1.msra.mxu0 0.0
    %182 = vmatprep.subr.mxu0 0.0
    %183 = vmatpush1.msra.mxu0 0.0
    %184 = vmatprep.subr.mxu0 0.0
    %185 = vmatpush1.msra.mxu0 0.0
    %186 = vmatprep.subr.mxu0 0.0
    %187 = vmatpush1.msra.mxu0 0.0
    %188 = vmatprep.subr.mxu0 0.0
    %189 = vmatpush1.msra.mxu0 0.0
    %190 = vmatprep.subr.mxu0 0.0
    %191 = vmatpush1.msra.mxu0 0.0
    %192 = vmatprep.subr.mxu0 0.0
    %193 = vmatpush1.msra.mxu0 0.0
    %194 = vmatprep.subr.mxu0 0.0
    %195 = vmatpush1.msra.mxu0 0.0
    %196 = vmatprep.subr.mxu0 0.0
    %197 = vmatpush1.msra.mxu0 0.0
    %198 = vmatprep.subr.mxu0 0.0
    %199 = vmatpush1.msra.mxu0 0.0
    %200 = vmatprep.mubr.f32.mxu0 0.0
    %201 = vmatmul.mubr.f32.gmra.mrb[0].mxu0 %v125
    %v202 = vpop.f32.mrb[0].mxu0
    %v203 = vadd.f32 %v121, %v202
    %v204 = vpop.f32.mrb[0].mxu0
    %205 = vmatprep.mubr.f32.mxu0 0.0
    %206 = vmatmul.mubr.f32.gmra.mrb[0].mxu0 %v128
    %v207 = vpop.f32.mrb[0].mxu0
    %v208 = vadd.f32 %v121, %v207
    %v209 = vpop.f32.mrb[0].mxu0
    %210 = vmatprep.mubr.f32.mxu0 0.0
    %211 = vmatmul.mubr.f32.gmra.mrb[0].mxu0 %v131
    %v212 = vpop.f32.mrb[0].mxu0
    %v213 = vadd.f32 %v121, %v212
    %v214 = vpop.f32.mrb[0].mxu0
    %215 = vmatprep.mubr.f32.mxu0 0.0
    %216 = vmatmul.mubr.f32.gmra.mrb[0].mxu0 %v134
    %v217 = vpop.f32.mrb[0].mxu0
    %v218 = vadd.f32 %v121, %v217
    %v219 = vpop.f32.mrb[0].mxu0
    %220 = vdwg.mxu0
    %v221 = vmax.f32 %v203, 0.0
    %v222 = vmax.f32 %v208, 0.0
    %v223 = vmax.f32 %v213, 0.0
    %v224 = vmax.f32 %v218, 0.0
    %v225 = vld [vmem:[#allocation7] sm:$0xff]
    %v226 = vld [vmem:[#allocation7 + $0x8] sm:$0xff]
    %v227 = vld [vmem:[#allocation7 + $0x10] sm:$0xff]
    %v228 = vld [vmem:[#allocation7 + $0x18] sm:$0xff]
    %v229 = vld [vmem:[#allocation7 + $0x20] sm:$0xff]
    %v230 = vld [vmem:[#allocation7 + $0x28] sm:$0xff]
    %v231 = vld [vmem:[#allocation7 + $0x30] sm:$0xff]
    %v232 = vld [vmem:[#allocation7 + $0x38] sm:$0xff]
    %v233 = vld [vmem:[#allocation7 + $0x40] sm:$0xff]
    %v234 = vld [vmem:[#allocation7 + $0x48] sm:$0xff]
    %v235 = vld [vmem:[#allocation7 + $0x50] sm:$0xff]
    %v236 = vld [vmem:[#allocation7 + $0x58] sm:$0xff]
    %v237 = vld [vmem:[#allocation7 + $0x60] sm:$0xff]
    %v238 = vld [vmem:[#allocation7 + $0x68] sm:$0xff]
    %v239 = vld [vmem:[#allocation7 + $0x70] sm:$0xff]
    %v240 = vld [vmem:[#allocation7 + $0x78] sm:$0xff]
    %v241 = vld [vmem:[%s4] sm:$0x1]
    %v243 = vlaneseq
    %v244 = vshrl.u32 %v243, 7
    %v245 = vsub.s32 0, %v244
    %v246 = vrot.slane %v241, %v245
    %248 = vmatprep.subr.mxu0 0.0
    %249 = vmatpush1.msra.mxu0 %v225
    %250 = vmatprep.subr.mxu0 0.0
    %251 = vmatpush1.msra.mxu0 %v226
    %252 = vmatprep.subr.mxu0 0.0
    %253 = vmatpush1.msra.mxu0 %v227
    %254 = vmatprep.subr.mxu0 0.0
    %255 = vmatpush1.msra.mxu0 %v228
    %256 = vmatprep.subr.mxu0 0.0
    %257 = vmatpush1.msra.mxu0 %v229
    %258 = vmatprep.subr.mxu0 0.0
    %259 = vmatpush1.msra.mxu0 %v230
    %260 = vmatprep.subr.mxu0 0.0
    %261 = vmatpush1.msra.mxu0 %v231
    %262 = vmatprep.subr.mxu0 0.0
    %263 = vmatpush1.msra.mxu0 %v232
    %264 = vmatprep.subr.mxu0 0.0
    %265 = vmatpush1.msra.mxu0 %v233
    %266 = vmatprep.subr.mxu0 0.0
    %267 = vmatpush1.msra.mxu0 %v234
    %268 = vmatprep.subr.mxu0 0.0
    %269 = vmatpush1.msra.mxu0 %v235
    %270 = vmatprep.subr.mxu0 0.0
    %271 = vmatpush1.msra.mxu0 %v236
    %272 = vmatprep.subr.mxu0 0.0
    %273 = vmatpush1.msra.mxu0 %v237
    %274 = vmatprep.subr.mxu0 0.0
    %275 = vmatpush1.msra.mxu0 %v238
    %276 = vmatprep.subr.mxu0 0.0
    %277 = vmatpush1.msra.mxu0 %v239
    %278 = vmatprep.subr.mxu0 0.0
    %279 = vmatpush1.msra.mxu0 %v240
    %280 = vmatprep.subr.mxu0 0.0
    %281 = vmatpush1.msra.mxu0 0.0
    %282 = vmatprep.subr.mxu0 0.0
    %283 = vmatpush1.msra.mxu0 0.0
    %284 = vmatprep.subr.mxu0 0.0
    %285 = vmatpush1.msra.mxu0 0.0
    %286 = vmatprep.subr.mxu0 0.0
    %287 = vmatpush1.msra.mxu0 0.0
    %288 = vmatprep.subr.mxu0 0.0
    %289 = vmatpush1.msra.mxu0 0.0
    %290 = vmatprep.subr.mxu0 0.0
    %291 = vmatpush1.msra.mxu0 0.0
    %292 = vmatprep.subr.mxu0 0.0
    %293 = vmatpush1.msra.mxu0 0.0
    %294 = vmatprep.subr.mxu0 0.0
    %295 = vmatpush1.msra.mxu0 0.0
    %296 = vmatprep.subr.mxu0 0.0
    %297 = vmatpush1.msra.mxu0 0.0
    %298 = vmatprep.subr.mxu0 0.0
    %299 = vmatpush1.msra.mxu0 0.0
    %300 = vmatprep.subr.mxu0 0.0
    %301 = vmatpush1.msra.mxu0 0.0
    %302 = vmatprep.subr.mxu0 0.0
    %303 = vmatpush1.msra.mxu0 0.0
    %304 = vmatprep.subr.mxu0 0.0
    %305 = vmatpush1.msra.mxu0 0.0
    %306 = vmatprep.subr.mxu0 0.0
    %307 = vmatpush1.msra.mxu0 0.0
    %308 = vmatprep.subr.mxu0 0.0
    %309 = vmatpush1.msra.mxu0 0.0
    %310 = vmatprep.subr.mxu0 0.0
    %311 = vmatpush1.msra.mxu0 0.0
    %312 = vmatprep.mubr.f32.mxu0 0.0
    %313 = vmatmul.mubr.f32.gmra.mrb[0].mxu0 %v221
    %v314 = vpop.f32.mrb[0].mxu0
    %v315 = vadd.f32 %v246, %v314
    %v316 = vpop.f32.mrb[0].mxu0
    %317 = vmatprep.mubr.f32.mxu0 0.0
    %318 = vmatmul.mubr.f32.gmra.mrb[0].mxu0 %v222
    %v319 = vpop.f32.mrb[0].mxu0
    %v320 = vadd.f32 %v246, %v319
    %v321 = vpop.f32.mrb[0].mxu0
    %322 = vmatprep.mubr.f32.mxu0 0.0
    %323 = vmatmul.mubr.f32.gmra.mrb[0].mxu0 %v223
    %v324 = vpop.f32.mrb[0].mxu0
    %v325 = vadd.f32 %v246, %v324
    %v326 = vpop.f32.mrb[0].mxu0
    %327 = vmatprep.mubr.f32.mxu0 0.0
    %328 = vmatmul.mubr.f32.gmra.mrb[0].mxu0 %v224
    %v329 = vpop.f32.mrb[0].mxu0
    %v330 = vadd.f32 %v246, %v329
    %v331 = vpop.f32.mrb[0].mxu0
    %332 = vdwg.mxu0
    %v333 = vmax.f32 %v315, 0.0
    %v334 = vmax.f32 %v320, 0.0
    %v335 = vmax.f32 %v325, 0.0
    %v336 = vmax.f32 %v330, 0.0
    %v337 = vld [vmem:[#allocation8] sm:$0xff]
    %v338 = vld [vmem:[#allocation8 + $0x8] sm:$0xff]
    %v339 = vld [vmem:[#allocation8 + $0x10] sm:$0xff]
    %v340 = vld [vmem:[#allocation8 + $0x18] sm:$0xff]
    %v341 = vld [vmem:[#allocation8 + $0x20] sm:$0xff]
    %v342 = vld [vmem:[#allocation8 + $0x28] sm:$0xff]
    %v343 = vld [vmem:[#allocation8 + $0x30] sm:$0xff]
    %v344 = vld [vmem:[#allocation8 + $0x38] sm:$0xff]
    %v345 = vld [vmem:[#allocation8 + $0x40] sm:$0xff]
    %v346 = vld [vmem:[#allocation8 + $0x48] sm:$0xff]
    %v347 = vld [vmem:[#allocation8 + $0x50] sm:$0xff]
    %v348 = vld [vmem:[#allocation8 + $0x58] sm:$0xff]
    %v349 = vld [vmem:[#allocation8 + $0x60] sm:$0xff]
    %v350 = vld [vmem:[#allocation8 + $0x68] sm:$0xff]
    %v351 = vld [vmem:[#allocation8 + $0x70] sm:$0xff]
    %v352 = vld [vmem:[#allocation8 + $0x78] sm:$0xff]
    %v353 = vld [vmem:[%s6] sm:$0x1]
    %v355 = vlaneseq
    %v356 = vshrl.u32 %v355, 7
    %v357 = vsub.s32 0, %v356
    %v358 = vrot.slane %v353, %v357
    %360 = vmatprep.subr.mxu0 0.0
    %361 = vmatpush1.msra.mxu0 %v337
    %362 = vmatprep.subr.mxu0 0.0
    %363 = vmatpush1.msra.mxu0 %v338
    %364 = vmatprep.subr.mxu0 0.0
    %365 = vmatpush1.msra.mxu0 %v339
    %366 = vmatprep.subr.mxu0 0.0
    %367 = vmatpush1.msra.mxu0 %v340
    %368 = vmatprep.subr.mxu0 0.0
    %369 = vmatpush1.msra.mxu0 %v341
    %370 = vmatprep.subr.mxu0 0.0
    %371 = vmatpush1.msra.mxu0 %v342
    %372 = vmatprep.subr.mxu0 0.0
    %373 = vmatpush1.msra.mxu0 %v343
    %374 = vmatprep.subr.mxu0 0.0
    %375 = vmatpush1.msra.mxu0 %v344
    %376 = vmatprep.subr.mxu0 0.0
    %377 = vmatpush1.msra.mxu0 %v345
    %378 = vmatprep.subr.mxu0 0.0
    %379 = vmatpush1.msra.mxu0 %v346
    %380 = vmatprep.subr.mxu0 0.0
    %381 = vmatpush1.msra.mxu0 %v347
    %382 = vmatprep.subr.mxu0 0.0
    %383 = vmatpush1.msra.mxu0 %v348
    %384 = vmatprep.subr.mxu0 0.0
    %385 = vmatpush1.msra.mxu0 %v349
    %386 = vmatprep.subr.mxu0 0.0
    %387 = vmatpush1.msra.mxu0 %v350
    %388 = vmatprep.subr.mxu0 0.0
    %389 = vmatpush1.msra.mxu0 %v351
    %390 = vmatprep.subr.mxu0 0.0
    %391 = vmatpush1.msra.mxu0 %v352
    %392 = vmatprep.subr.mxu0 0.0
    %393 = vmatpush1.msra.mxu0 0.0
    %394 = vmatprep.subr.mxu0 0.0
    %395 = vmatpush1.msra.mxu0 0.0
    %396 = vmatprep.subr.mxu0 0.0
    %397 = vmatpush1.msra.mxu0 0.0
    %398 = vmatprep.subr.mxu0 0.0
    %399 = vmatpush1.msra.mxu0 0.0
    %400 = vmatprep.subr.mxu0 0.0
    %401 = vmatpush1.msra.mxu0 0.0
    %402 = vmatprep.subr.mxu0 0.0
    %403 = vmatpush1.msra.mxu0 0.0
    %404 = vmatprep.subr.mxu0 0.0
    %405 = vmatpush1.msra.mxu0 0.0
    %406 = vmatprep.subr.mxu0 0.0
    %407 = vmatpush1.msra.mxu0 0.0
    %408 = vmatprep.subr.mxu0 0.0
    %409 = vmatpush1.msra.mxu0 0.0
    %410 = vmatprep.subr.mxu0 0.0
    %411 = vmatpush1.msra.mxu0 0.0
    %412 = vmatprep.subr.mxu0 0.0
    %413 = vmatpush1.msra.mxu0 0.0
    %414 = vmatprep.subr.mxu0 0.0
    %415 = vmatpush1.msra.mxu0 0.0
    %416 = vmatprep.subr.mxu0 0.0
    %417 = vmatpush1.msra.mxu0 0.0
    %418 = vmatprep.subr.mxu0 0.0
    %419 = vmatpush1.msra.mxu0 0.0
    %420 = vmatprep.subr.mxu0 0.0
    %421 = vmatpush1.msra.mxu0 0.0
    %422 = vmatprep.subr.mxu0 0.0
    %423 = vmatpush1.msra.mxu0 0.0
    %424 = vmatprep.mubr.f32.mxu0 0.0
    %425 = vmatmul.mubr.f32.gmra.mrb[0].mxu0 %v333
    %v426 = vpop.f32.mrb[0].mxu0
    %v427 = vadd.f32 %v358, %v426
    %v428 = vpop.f32.mrb[0].mxu0
    %429 = vmatprep.mubr.f32.mxu0 0.0
    %430 = vmatmul.mubr.f32.gmra.mrb[0].mxu0 %v334
    %v431 = vpop.f32.mrb[0].mxu0
    %v432 = vadd.f32 %v358, %v431
    %v433 = vpop.f32.mrb[0].mxu0
    %434 = vmatprep.mubr.f32.mxu0 0.0
    %435 = vmatmul.mubr.f32.gmra.mrb[0].mxu0 %v335
    %v436 = vpop.f32.mrb[0].mxu0
    %v437 = vadd.f32 %v358, %v436
    %v438 = vpop.f32.mrb[0].mxu0
    %439 = vmatprep.mubr.f32.mxu0 0.0
    %440 = vmatmul.mubr.f32.gmra.mrb[0].mxu0 %v336
    %v441 = vpop.f32.mrb[0].mxu0
    %v442 = vadd.f32 %v358, %v441
    %v443 = vpop.f32.mrb[0].mxu0
    %444 = vdwg.mxu0
    %445 = vmax.xlane.f32.xlu0 %v427
    %v446 = vpop.xlane.xlu0 %445
    %447 = vmax.xlane.f32.xlu0 %v432
    %v448 = vpop.xlane.xlu0 %447
    %449 = vmax.xlane.f32.xlu0 %v437
    %v450 = vpop.xlane.xlu0 %449
    %451 = vmax.xlane.f32.xlu0 %v442
    %v452 = vpop.xlane.xlu0 %451
    %v453 = vsub.f32 %v427, %v446
    %v454 = vsub.f32 %v432, %v448
    %v455 = vsub.f32 %v437, %v450
    %v456 = vsub.f32 %v442, %v452
    %v457 = vmul.f32 %v453, 1.442695
    %v458 = vpow.pop %v457
    %v459 = vmul.f32 %v454, 1.442695
    %v460 = vpow.pop %v459
    %v461 = vmul.f32 %v455, 1.442695
    %v462 = vpow.pop %v461
    %v463 = vmul.f32 %v456, 1.442695
    %v464 = vpow.pop %v463
    %465 = vadd.xlane.f32.xlu0 %v458
    %v466 = vpop.xlane.xlu0 %465
    %467 = vadd.xlane.f32.xlu0 %v460
    %v468 = vpop.xlane.xlu0 %467
    %469 = vadd.xlane.f32.xlu0 %v462
    %v470 = vpop.xlane.xlu0 %469
    %471 = vadd.xlane.f32.xlu0 %v464
    %v472 = vpop.xlane.xlu0 %471
    %v473 = vrcp.pop %v466
    %v474 = vrcp.pop %v468
    %v475 = vrcp.pop %v470
    %v476 = vrcp.pop %v472
    %v477 = vmul.f32 %v458, %v473
    %v478 = vmul.f32 %v460, %v474
    %v479 = vmul.f32 %v462, %v475
    %v480 = vmul.f32 %v464, %v476
    %481 = vst [vmem:[#allocation12] sm:$0xff] %v477
    %482 = vst [vmem:[#allocation12 + $0x8] sm:$0xff] %v478
    %483 = vst [vmem:[#allocation12 + $0x10] sm:$0xff] %v479
    %484 = vst [vmem:[#allocation12 + $0x18] sm:$0xff] %v480
    %v485 = vld [vmem:[#allocation10] sm:$0xff]
    %v486 = vld [vmem:[#allocation10 + $0x8] sm:$0xff]
    %v487 = vld [vmem:[#allocation10 + $0x10] sm:$0xff]
    %v488 = vld [vmem:[#allocation10 + $0x18] sm:$0xff]
    %v489 = vld [vmem:[#allocation10 + $0x20] sm:$0xff]
    %v490 = vld [vmem:[#allocation10 + $0x28] sm:$0xff]
    %v491 = vld [vmem:[#allocation10 + $0x30] sm:$0xff]
    %v492 = vld [vmem:[#allocation10 + $0x38] sm:$0xff]
    %v493 = vld [vmem:[#allocation10 + $0x40] sm:$0xff]
    %v494 = vld [vmem:[#allocation10 + $0x48] sm:$0xff]
    %v495 = vld [vmem:[#allocation10 + $0x50] sm:$0xff]
    %v496 = vld [vmem:[#allocation10 + $0x58] sm:$0xff]
    %v497 = vld [vmem:[#allocation10 + $0x60] sm:$0xff]
    %v498 = vld [vmem:[#allocation10 + $0x68] sm:$0xff]
    %v499 = vld [vmem:[#allocation10 + $0x70] sm:$0xff]
    %v500 = vld [vmem:[#allocation10 + $0x78] sm:$0xff]
    %v501 = vld [vmem:[#allocation10 + $0x80] sm:$0xff]
    %v502 = vld [vmem:[#allocation10 + $0x88] sm:$0xff]
    %v503 = vld [vmem:[#allocation10 + $0x90] sm:$0xff]
    %v504 = vld [vmem:[#allocation10 + $0x98] sm:$0xff]
    %v505 = vld [vmem:[#allocation10 + $0xa0] sm:$0xff]
    %v506 = vld [vmem:[#allocation10 + $0xa8] sm:$0xff]
    %v507 = vld [vmem:[#allocation10 + $0xb0] sm:$0xff]
    %v508 = vld [vmem:[#allocation10 + $0xb8] sm:$0xff]
    %v509 = vld [vmem:[#allocation10 + $0xc0] sm:$0xff]
    %v510 = vld [vmem:[#allocation10 + $0xc8] sm:$0xff]
    %v511 = vld [vmem:[#allocation10 + $0xd0] sm:$0xff]
    %v512 = vld [vmem:[#allocation10 + $0xd8] sm:$0xff]
    %v513 = vld [vmem:[#allocation10 + $0xe0] sm:$0xff]
    %v514 = vld [vmem:[#allocation10 + $0xe8] sm:$0xff]
    %v515 = vld [vmem:[#allocation10 + $0xf0] sm:$0xff]
    %v516 = vld [vmem:[#allocation10 + $0xf8] sm:$0xff]
    %v517 = vld [vmem:[%s8] sm:$0xf]
    %v519 = vlaneseq
    %v520 = vshrl.u32 %v519, 7
    %v521 = vsub.s32 0, %v520
    %v522 = vrot.slane %v517, %v521
    %v523 = vlaneseq
    %v524 = vshrl.u32 %v523, 7
    %v525 = vsub.s32 1, %v524
    %v526 = vrot.slane %v517, %v525
    %v527 = vlaneseq
    %v528 = vshrl.u32 %v527, 7
    %v529 = vsub.s32 2, %v528
    %v530 = vrot.slane %v517, %v529
    %v531 = vlaneseq
    %v532 = vshrl.u32 %v531, 7
    %v533 = vsub.s32 3, %v532
    %v534 = vrot.slane %v517, %v533
    %539 = vmatprep.subr.mxu0 %v486
    %540 = vmatpush1.msra.mxu0 %v485
    %541 = vmatprep.subr.mxu0 %v490
    %542 = vmatpush1.msra.mxu0 %v489
    %543 = vmatprep.subr.mxu0 %v494
    %544 = vmatpush1.msra.mxu0 %v493
    %545 = vmatprep.subr.mxu0 %v498
    %546 = vmatpush1.msra.mxu0 %v497
    %547 = vmatprep.subr.mxu0 %v502
    %548 = vmatpush1.msra.mxu0 %v501
    %549 = vmatprep.subr.mxu0 %v506
    %550 = vmatpush1.msra.mxu0 %v505
    %551 = vmatprep.subr.mxu0 %v510
    %552 = vmatpush1.msra.mxu0 %v509
    %553 = vmatprep.subr.mxu0 %v514
    %554 = vmatpush1.msra.mxu0 %v513
    %555 = vmatprep.subr.mxu0 0.0
    %556 = vmatpush1.msra.mxu0 0.0
    %557 = vmatprep.subr.mxu0 0.0
    %558 = vmatpush1.msra.mxu0 0.0
    %559 = vmatprep.subr.mxu0 0.0
    %560 = vmatpush1.msra.mxu0 0.0
    %561 = vmatprep.subr.mxu0 0.0
    %562 = vmatpush1.msra.mxu0 0.0
    %563 = vmatprep.subr.mxu0 0.0
    %564 = vmatpush1.msra.mxu0 0.0
    %565 = vmatprep.subr.mxu0 0.0
    %566 = vmatpush1.msra.mxu0 0.0
    %567 = vmatprep.subr.mxu0 0.0
    %568 = vmatpush1.msra.mxu0 0.0
    %569 = vmatprep.subr.mxu0 0.0
    %570 = vmatpush1.msra.mxu0 0.0
    %571 = vmatprep.subr.mxu0 0.0
    %572 = vmatpush1.msra.mxu0 0.0
    %573 = vmatprep.subr.mxu0 0.0
    %574 = vmatpush1.msra.mxu0 0.0
    %575 = vmatprep.subr.mxu0 0.0
    %576 = vmatpush1.msra.mxu0 0.0
    %577 = vmatprep.subr.mxu0 0.0
    %578 = vmatpush1.msra.mxu0 0.0
    %579 = vmatprep.subr.mxu0 0.0
    %580 = vmatpush1.msra.mxu0 0.0
    %581 = vmatprep.subr.mxu0 0.0
    %582 = vmatpush1.msra.mxu0 0.0
    %583 = vmatprep.subr.mxu0 0.0
    %584 = vmatpush1.msra.mxu0 0.0
    %585 = vmatprep.subr.mxu0 0.0
    %586 = vmatpush1.msra.mxu0 0.0
    %587 = vmatprep.subr.mxu0 0.0
    %588 = vmatpush1.msra.mxu0 0.0
    %589 = vmatprep.subr.mxu0 0.0
    %590 = vmatpush1.msra.mxu0 0.0
    %591 = vmatprep.subr.mxu0 0.0
    %592 = vmatpush1.msra.mxu0 0.0
    %593 = vmatprep.subr.mxu0 0.0
    %594 = vmatpush1.msra.mxu0 0.0
    %595 = vmatprep.subr.mxu0 0.0
    %596 = vmatpush1.msra.mxu0 0.0
    %597 = vmatprep.subr.mxu0 0.0
    %598 = vmatpush1.msra.mxu0 0.0
    %599 = vmatprep.subr.mxu0 0.0
    %600 = vmatpush1.msra.mxu0 0.0
    %601 = vmatprep.subr.mxu0 0.0
    %602 = vmatpush1.msra.mxu0 0.0
    %603 = vmatprep.mubr.f32.mxu0 0.0
    %604 = vmatmul.mubr.f32.gmra.mrb[0].mxu0 %v125
    %v605 = vpop.f32.mrb[0].mxu0
    %v606 = vadd.f32 %v522, %v605
    %v607 = vpop.f32.mrb[0].mxu0
    %v608 = vadd.f32 %v526, %v607
    %609 = vmatprep.mubr.f32.mxu0 0.0
    %610 = vmatmul.mubr.f32.gmra.mrb[0].mxu0 %v128
    %v611 = vpop.f32.mrb[0].mxu0
    %v612 = vadd.f32 %v522, %v611
    %v613 = vpop.f32.mrb[0].mxu0
    %v614 = vadd.f32 %v526, %v613
    %615 = vmatprep.mubr.f32.mxu0 0.0
    %616 = vmatmul.mubr.f32.gmra.mrb[0].mxu0 %v131
    %v617 = vpop.f32.mrb[0].mxu0
    %v618 = vadd.f32 %v522, %v617
    %v619 = vpop.f32.mrb[0].mxu0
    %v620 = vadd.f32 %v526, %v619
    %621 = vmatprep.mubr.f32.mxu0 0.0
    %622 = vmatmul.mubr.f32.gmra.mrb[0].mxu0 %v134
    %v623 = vpop.f32.mrb[0].mxu0
    %v624 = vadd.f32 %v522, %v623
    %v625 = vpop.f32.mrb[0].mxu0
    %v626 = vadd.f32 %v526, %v625
    %627 = vdwg.mxu0
    %628 = vmatprep.subr.mxu0 %v488
    %629 = vmatpush1.msra.mxu0 %v487
    %630 = vmatprep.subr.mxu0 %v492
    %631 = vmatpush1.msra.mxu0 %v491
    %632 = vmatprep.subr.mxu0 %v496
    %633 = vmatpush1.msra.mxu0 %v495
    %634 = vmatprep.subr.mxu0 %v500
    %635 = vmatpush1.msra.mxu0 %v499
    %636 = vmatprep.subr.mxu0 %v504
    %637 = vmatpush1.msra.mxu0 %v503
    %638 = vmatprep.subr.mxu0 %v508
    %639 = vmatpush1.msra.mxu0 %v507
    %640 = vmatprep.subr.mxu0 %v512
    %641 = vmatpush1.msra.mxu0 %v511
    %642 = vmatprep.subr.mxu0 %v516
    %643 = vmatpush1.msra.mxu0 %v515
    %644 = vmatprep.subr.mxu0 0.0
    %645 = vmatpush1.msra.mxu0 0.0
    %646 = vmatprep.subr.mxu0 0.0
    %647 = vmatpush1.msra.mxu0 0.0
    %648 = vmatprep.subr.mxu0 0.0
    %649 = vmatpush1.msra.mxu0 0.0
    %650 = vmatprep.subr.mxu0 0.0
    %651 = vmatpush1.msra.mxu0 0.0
    %652 = vmatprep.subr.mxu0 0.0
    %653 = vmatpush1.msra.mxu0 0.0
    %654 = vmatprep.subr.mxu0 0.0
    %655 = vmatpush1.msra.mxu0 0.0
    %656 = vmatprep.subr.mxu0 0.0
    %657 = vmatpush1.msra.mxu0 0.0
    %658 = vmatprep.subr.mxu0 0.0
    %659 = vmatpush1.msra.mxu0 0.0
    %660 = vmatprep.subr.mxu0 0.0
    %661 = vmatpush1.msra.mxu0 0.0
    %662 = vmatprep.subr.mxu0 0.0
    %663 = vmatpush1.msra.mxu0 0.0
    %664 = vmatprep.subr.mxu0 0.0
    %665 = vmatpush1.msra.mxu0 0.0
    %666 = vmatprep.subr.mxu0 0.0
    %667 = vmatpush1.msra.mxu0 0.0
    %668 = vmatprep.subr.mxu0 0.0
    %669 = vmatpush1.msra.mxu0 0.0
    %670 = vmatprep.subr.mxu0 0.0
    %671 = vmatpush1.msra.mxu0 0.0
    %672 = vmatprep.subr.mxu0 0.0
    %673 = vmatpush1.msra.mxu0 0.0
    %674 = vmatprep.subr.mxu0 0.0
    %675 = vmatpush1.msra.mxu0 0.0
    %676 = vmatprep.subr.mxu0 0.0
    %677 = vmatpush1.msra.mxu0 0.0
    %678 = vmatprep.subr.mxu0 0.0
    %679 = vmatpush1.msra.mxu0 0.0
    %680 = vmatprep.subr.mxu0 0.0
    %681 = vmatpush1.msra.mxu0 0.0
    %682 = vmatprep.subr.mxu0 0.0
    %683 = vmatpush1.msra.mxu0 0.0
    %684 = vmatprep.subr.mxu0 0.0
    %685 = vmatpush1.msra.mxu0 0.0
    %686 = vmatprep.subr.mxu0 0.0
    %687 = vmatpush1.msra.mxu0 0.0
    %688 = vmatprep.subr.mxu0 0.0
    %689 = vmatpush1.msra.mxu0 0.0
    %690 = vmatprep.subr.mxu0 0.0
    %691 = vmatpush1.msra.mxu0 0.0
    %692 = vmatprep.mubr.f32.mxu0 0.0
    %693 = vmatmul.mubr.f32.gmra.mrb[0].mxu0 %v125
    %v694 = vpop.f32.mrb[0].mxu0
    %v695 = vadd.f32 %v530, %v694
    %v696 = vpop.f32.mrb[0].mxu0
    %v697 = vadd.f32 %v534, %v696
    %698 = vmatprep.mubr.f32.mxu0 0.0
    %699 = vmatmul.mubr.f32.gmra.mrb[0].mxu0 %v128
    %v700 = vpop.f32.mrb[0].mxu0
    %v701 = vadd.f32 %v530, %v700
    %v702 = vpop.f32.mrb[0].mxu0
    %v703 = vadd.f32 %v534, %v702
    %704 = vmatprep.mubr.f32.mxu0 0.0
    %705 = vmatmul.mubr.f32.gmra.mrb[0].mxu0 %v131
    %v706 = vpop.f32.mrb[0].mxu0
    %v707 = vadd.f32 %v530, %v706
    %v708 = vpop.f32.mrb[0].mxu0
    %v709 = vadd.f32 %v534, %v708
    %710 = vmatprep.mubr.f32.mxu0 0.0
    %711 = vmatmul.mubr.f32.gmra.mrb[0].mxu0 %v134
    %v712 = vpop.f32.mrb[0].mxu0
    %v713 = vadd.f32 %v530, %v712
    %v714 = vpop.f32.mrb[0].mxu0
    %v715 = vadd.f32 %v534, %v714
    %716 = vdwg.mxu0
    %v717 = vmax.f32 %v606, 0.0
    %v718 = vmax.f32 %v608, 0.0
    %v719 = vmax.f32 %v695, 0.0
    %v720 = vmax.f32 %v697, 0.0
    %v721 = vmax.f32 %v612, 0.0
    %v722 = vmax.f32 %v614, 0.0
    %v723 = vmax.f32 %v701, 0.0
    %v724 = vmax.f32 %v703, 0.0
    %v725 = vmax.f32 %v618, 0.0
    %v726 = vmax.f32 %v620, 0.0
    %v727 = vmax.f32 %v707, 0.0
    %v728 = vmax.f32 %v709, 0.0
    %v729 = vmax.f32 %v624, 0.0
    %v730 = vmax.f32 %v626, 0.0
    %v731 = vmax.f32 %v713, 0.0
    %v732 = vmax.f32 %v715, 0.0
    %734 = vset.pattern.permute.xlu0 0
    %735 = vperm.xlu0 %734, %v477
    %v736 = vpop.permute.xlu0 %735
    %739 = vset.pattern.permute.xlu0 0
    %740 = vperm.xlu0 %739, %v478
    %v741 = vpop.permute.xlu0 %740
    %744 = vset.pattern.permute.xlu0 0
    %745 = vperm.xlu0 %744, %v479
    %v746 = vpop.permute.xlu0 %745
    %749 = vset.pattern.permute.xlu0 0
    %750 = vperm.xlu0 %749, %v480
    %v751 = vpop.permute.xlu0 %750
    %v753 = vmul.f32 %v736, %v717
    %v754 = vmul.f32 %v741, %v721
    %v755 = vmul.f32 %v746, %v725
    %v756 = vmul.f32 %v751, %v729
    %757 = vset.pattern.permute.xlu0 1
    %758 = vperm.xlu0 %757, %v477
    %v759 = vpop.permute.xlu0 %758
    %761 = vset.pattern.permute.xlu0 1
    %762 = vperm.xlu0 %761, %v478
    %v763 = vpop.permute.xlu0 %762
    %765 = vset.pattern.permute.xlu0 1
    %766 = vperm.xlu0 %765, %v479
    %v767 = vpop.permute.xlu0 %766
    %769 = vset.pattern.permute.xlu0 1
    %770 = vperm.xlu0 %769, %v480
    %v771 = vpop.permute.xlu0 %770
    %v773 = vmul.f32 %v759, %v718
    %v774 = vmul.f32 %v763, %v722
    %v775 = vmul.f32 %v767, %v726
    %v776 = vmul.f32 %v771, %v730
    %v777 = vadd.f32 %v753, %v773
    %v778 = vadd.f32 %v754, %v774
    %v779 = vadd.f32 %v755, %v775
    %v780 = vadd.f32 %v756, %v776
    %781 = vset.pattern.permute.xlu0 2
    %782 = vperm.xlu0 %781, %v477
    %v783 = vpop.permute.xlu0 %782
    %785 = vset.pattern.permute.xlu0 2
    %786 = vperm.xlu0 %785, %v478
    %v787 = vpop.permute.xlu0 %786
    %789 = vset.pattern.permute.xlu0 2
    %790 = vperm.xlu0 %789, %v479
    %v791 = vpop.permute.xlu0 %790
    %793 = vset.pattern.permute.xlu0 2
    %794 = vperm.xlu0 %793, %v480
    %v795 = vpop.permute.xlu0 %794
    %v797 = vmul.f32 %v783, %v719
    %v798 = vmul.f32 %v787, %v723
    %v799 = vmul.f32 %v791, %v727
    %v800 = vmul.f32 %v795, %v731
    %v801 = vadd.f32 %v777, %v797
    %v802 = vadd.f32 %v778, %v798
    %v803 = vadd.f32 %v779, %v799
    %v804 = vadd.f32 %v780, %v800
    %805 = vset.pattern.permute.xlu0 3
    %806 = vperm.xlu0 %805, %v477
    %v807 = vpop.permute.xlu0 %806
    %809 = vset.pattern.permute.xlu0 3
    %810 = vperm.xlu0 %809, %v478
    %v811 = vpop.permute.xlu0 %810
    %813 = vset.pattern.permute.xlu0 3
    %814 = vperm.xlu0 %813, %v479
    %v815 = vpop.permute.xlu0 %814
    %817 = vset.pattern.permute.xlu0 3
    %818 = vperm.xlu0 %817, %v480
    %v819 = vpop.permute.xlu0 %818
    %v821 = vmul.f32 %v807, %v720
    %v822 = vmul.f32 %v811, %v724
    %v823 = vmul.f32 %v815, %v728
    %v824 = vmul.f32 %v819, %v732
    %v825 = vadd.f32 %v801, %v821
    %v826 = vadd.f32 %v802, %v822
    %v827 = vadd.f32 %v803, %v823
    %v828 = vadd.f32 %v804, %v824
    %829 = vst [vmem:[#allocation11] sm:$0xff] %v825
    %830 = vst [vmem:[#allocation11 + $0x8] sm:$0xff] %v826
    %831 = vst [vmem:[#allocation11 + $0x10] sm:$0xff] %v827
    %832 = vst [vmem:[#allocation11 + $0x18] sm:$0xff] %v828
    // Predicated region
    $region58: #{tpu_custom_call.1} parent=1 // pred_check
      _
    $region59: #{tpu_custom_call.1} parent=1 // pred_check_branch
      %834 = sbr.rel (0) target = $region61
    $region60: #{tpu_custom_call.1} parent=1 // pred_region
      %s836 = ssub.s32 512, 512
      %837 = vsyncadd [#allocation4], %s836
      %s838 = sshll.u32 [#allocation11], 4
      %s839 = int_to_ptr.vmem [resolvable:$true] %s838
      %844 = dma.vmem_to_hbm [thread:$0]  %s839, 512, %s9, [#allocation4], 128, 128, 8
    $region61: #{tpu_custom_call.1} parent=1 // pred_fallthru
      _
    // Predicated region
    $region62: #{tpu_custom_call.1} parent=1 // pred_check
      _
    $region63: #{tpu_custom_call.1} parent=1 // pred_check_branch
      %846 = sbr.rel (0) target = $region65
    $region64: #{tpu_custom_call.1} parent=1 // pred_region
      %s848 = ssub.s32 512, 512
      %849 = vsyncadd [#allocation13], %s848
      %s850 = sshll.u32 [#allocation12], 4
      %s851 = int_to_ptr.vmem [resolvable:$true] %s850
      %856 = dma.vmem_to_hbm [thread:$0]  %s851, 512, %s10, [#allocation13], 128, 128, 8
    $region65: #{tpu_custom_call.1} parent=1 // pred_fallthru
      _
    // Predicated region
    $region66: #{tpu_custom_call.1} parent=1 // pred_check
      _
    $region67: #{tpu_custom_call.1} parent=1 // pred_check_branch
      %858 = sbr.rel (0) target = $region69
    $region68: #{tpu_custom_call.1} parent=1 // pred_region
      %859 = dma.done [#allocation4], 512
    $region69: #{tpu_custom_call.1} parent=1 // pred_fallthru
      _
    // Predicated region
    $region70: #{tpu_custom_call.1} parent=1 // pred_check
      _
    $region71: #{tpu_custom_call.1} parent=1 // pred_check_branch
      %861 = sbr.rel (0) target = $region73
    $region72: #{tpu_custom_call.1} parent=1 // pred_region
      %862 = dma.done [#allocation13], 512
    $region73: #{tpu_custom_call.1} parent=1 // pred_fallthru
      _
    %863 = vsyncpa [#allocation3], 1
    %864 = vsyncpa [#allocation6], 1
    %865 = vsyncpa [#allocation9], 1
    %866 = vsyncpa [#allocation4], 1
    %867 = vsyncpa [#allocation13], 1

// kernel: tpu_custom_call.1
$region0: #{tpu_custom_call.1}
  #allocation0 [shape = 'u32[]', space=smem, size = 0x4, offset = 0x4, fixed_abs, tag = 'smem constant byte address 0x4 - core index']
  #allocation1 [shape = 'u32[144,128]{1,0:T(1,128)}', space=vmem, size = 0x12000, scoped, tag = 'internal scratch']
  %s0 = inlined_call_operand.hbm [shape: f32[32,64], index: 0, kind: input, shape index: {}]
  %s1 = inlined_call_operand.hbm [shape: f32[64,128], index: 1, kind: input, shape index: {}]
  %s2 = inlined_call_operand.vmem [shape: f32[1,128], index: 2, kind: input, shape index: {}]
  %s3 = inlined_call_operand.hbm [shape: f32[128,128], index: 3, kind: input, shape index: {}]
  %s4 = inlined_call_operand.vmem [shape: f32[1,128], index: 4, kind: input, shape index: {}]
  %s5 = inlined_call_operand.hbm [shape: f32[128,128], index: 5, kind: input, shape index: {}]
  %s6 = inlined_call_operand.vmem [shape: f32[1,128], index: 6, kind: input, shape index: {}]
  %s7 = inlined_call_operand.hbm [shape: f32[64,512], index: 7, kind: input, shape index: {}]
  %s8 = inlined_call_operand.vmem [shape: f32[1,512], index: 8, kind: input, shape index: {}]
  %s9 = inlined_call_operand.hbm [shape: f32[32,128], index: 9, kind: output, shape index: {0}]
  %s10 = inlined_call_operand.hbm [shape: f32[32,128], index: 10, kind: output, shape index: {1}]
  %11 = xla_tuple %s9, %s10
  %s12 = sld [smem:[#allocation0]]
  $region74: #{tpu_custom_call.1} parent=0
    _
  %s14 = ssub.s32 1, %s12
  %s15 = scalar_select 0, %s14, %s12
  $region1: #{tpu_custom_call.1} parent=0
    #allocation2 [shape = 'u8[16384]{0}', space=vmem, size = 0x4000, scoped, tag = 'input window, operand 0, single buffered']
    #allocation3 [shape = 's32[1]{0}', space=sflag, size = 0x4, scoped, tag = 'scoped memory for tpu_custom_call.1']
    #allocation4 [shape = 's32[1]{0}', space=sflag, size = 0x4, scoped, tag = 'scoped memory for tpu_custom_call.1']
    #allocation5 [shape = 'u8[32768]{0}', space=vmem, size = 0x8000, scoped, tag = 'input window, operand 1, single buffered']
    #allocation6 [shape = 's32[1]{0}', space=sflag, size = 0x4, scoped, tag = 'scoped memory for tpu_custom_call.1']
    #allocation7 [shape = 'u8[65536]{0}', space=vmem, size = 0x10000, scoped, tag = 'input window, operand 3, single buffered']
    #allocation8 [shape = 'u8[65536]{0}', space=vmem, size = 0x10000, scoped, tag = 'input window, operand 5, single buffered']
    #allocation9 [shape = 's32[1]{0}', space=sflag, size = 0x4, scoped, tag = 'scoped memory for tpu_custom_call.1']
    #allocation10 [shape = 'u8[131072]{0}', space=vmem, size = 0x20000, scoped, tag = 'input window, operand 7, single buffered']
    #allocation11 [shape = 'u8[16384]{0}', space=vmem, size = 0x4000, scoped, tag = 'output window, operand 0, single buffered']
    #allocation12 [shape = 'u8[16384]{0}', space=vmem, size = 0x4000, scoped, tag = 'output window, operand 1, single buffered']
    #allocation13 [shape = 's32[1]{0}', space=sflag, size = 0x4, scoped, tag = 'scoped memory for tpu_custom_call.1']
    %16 = vsyncpa [#allocation3], 0
    %17 = vsyncpa [#allocation6], 0
    %18 = vsyncpa [#allocation9], 0
    %19 = vsyncpa [#allocation4], 0
    %20 = vsyncpa [#allocation13], 0
    // Predicated region
    $region2: #{tpu_custom_call.1} parent=1 // pred_check
      _
    $region3: #{tpu_custom_call.1} parent=1 // pred_check_branch
      %22 = sbr.rel (0) target = $region5
    $region4: #{tpu_custom_call.1} parent=1 // pred_region
      %s24 = ssub.s32 512, 512
      %25 = vsyncadd [#allocation3], %s24
      %s26 = sshll.u32 [#allocation2], 4
      %s27 = int_to_ptr.vmem [resolvable:$true] %s26
      %32 = dma.hbm_to_vmem [thread:$0]  %s0, 512, %s27, [#allocation3], 128, 128, 8
    $region5: #{tpu_custom_call.1} parent=1 // pred_fallthru
      _
    // Predicated region
    $region6: #{tpu_custom_call.1} parent=1 // pred_check
      _
    $region7: #{tpu_custom_call.1} parent=1 // pred_check_branch
      %34 = sbr.rel (0) target = $region9
    $region8: #{tpu_custom_call.1} parent=1 // pred_region
      %s36 = ssub.s32 1024, 1024
      %37 = vsyncadd [#allocation6], %s36
      %s38 = sshll.u32 [#allocation5], 4
      %s39 = int_to_ptr.vmem [resolvable:$true] %s38
      %44 = dma.hbm_to_vmem [thread:$0]  %s1, 1024, %s39, [#allocation6], 128, 128, 8
    $region9: #{tpu_custom_call.1} parent=1 // pred_fallthru
      _
    // Predicated region
    $region10: #{tpu_custom_call.1} parent=1 // pred_check
      _
    $region11: #{tpu_custom_call.1} parent=1 // pred_check_branch
      %46 = sbr.rel (0) target = $region13
    $region12: #{tpu_custom_call.1} parent=1 // pred_region
      _
    $region13: #{tpu_custom_call.1} parent=1 // pred_fallthru
      _
    // Predicated region
    $region14: #{tpu_custom_call.1} parent=1 // pred_check
      _
    $region15: #{tpu_custom_call.1} parent=1 // pred_check_branch
      %48 = sbr.rel (0) target = $region17
    $region16: #{tpu_custom_call.1} parent=1 // pred_region
      %s50 = ssub.s32 2048, 2048
      %51 = vsyncadd [#allocation6], %s50
      %s52 = sshll.u32 [#allocation7], 4
      %s53 = int_to_ptr.vmem [resolvable:$true] %s52
      %58 = dma.hbm_to_vmem [thread:$0]  %s3, 2048, %s53, [#allocation6], 128, 128, 8
    $region17: #{tpu_custom_call.1} parent=1 // pred_fallthru
      _
    // Predicated region
    $region18: #{tpu_custom_call.1} parent=1 // pred_check
      _
    $region19: #{tpu_custom_call.1} parent=1 // pred_check_branch
      %60 = sbr.rel (0) target = $region21
    $region20: #{tpu_custom_call.1} parent=1 // pred_region
      _
    $region21: #{tpu_custom_call.1} parent=1 // pred_fallthru
      _
    // Predicated region
    $region22: #{tpu_custom_call.1} parent=1 // pred_check
      _
    $region23: #{tpu_custom_call.1} parent=1 // pred_check_branch
      %62 = sbr.rel (0) target = $region25
    $region24: #{tpu_custom_call.1} parent=1 // pred_region
      %s64 = ssub.s32 2048, 2048
      %65 = vsyncadd [#allocation9], %s64
      %s66 = sshll.u32 [#allocation8], 4
      %s67 = int_to_ptr.vmem [resolvable:$true] %s66
      %72 = dma.hbm_to_vmem [thread:$0]  %s5, 2048, %s67, [#allocation9], 128, 128, 8
    $region25: #{tpu_custom_call.1} parent=1 // pred_fallthru
      _
    // Predicated region
    $region26: #{tpu_custom_call.1} parent=1 // pred_check
      _
    $region27: #{tpu_custom_call.1} parent=1 // pred_check_branch
      %74 = sbr.rel (0) target = $region29
    $region28: #{tpu_custom_call.1} parent=1 // pred_region
      _
    $region29: #{tpu_custom_call.1} parent=1 // pred_fallthru
      _
    // Predicated region
    $region30: #{tpu_custom_call.1} parent=1 // pred_check
      _
    $region31: #{tpu_custom_call.1} parent=1 // pred_check_branch
      %76 = sbr.rel (0) target = $region33
    $region32: #{tpu_custom_call.1} parent=1 // pred_region
      %s78 = ssub.s32 4096, 4096
      %79 = vsyncadd [#allocation9], %s78
      %s80 = sshll.u32 [#allocation10], 4
      %s81 = int_to_ptr.vmem [resolvable:$true] %s80
      %86 = dma.hbm_to_vmem [thread:$0]  %s7, 4096, %s81, [#allocation9], 512, 512, 32
    $region33: #{tpu_custom_call.1} parent=1 // pred_fallthru
      _
    // Predicated region
    $region34: #{tpu_custom_call.1} parent=1 // pred_check
      _
    $region35: #{tpu_custom_call.1} parent=1 // pred_check_branch
      %88 = sbr.rel (0) target = $region37
    $region36: #{tpu_custom_call.1} parent=1 // pred_region
      _
    $region37: #{tpu_custom_call.1} parent=1 // pred_fallthru
      _
    // Predicated region
    $region38: #{tpu_custom_call.1} parent=1 // pred_check
      _
    $region39: #{tpu_custom_call.1} parent=1 // pred_check_branch
      %90 = sbr.rel (0) target = $region41
    $region40: #{tpu_custom_call.1} parent=1 // pred_region
      %91 = dma.done [#allocation3], 512
    $region41: #{tpu_custom_call.1} parent=1 // pred_fallthru
      _
    // Predicated region
    $region42: #{tpu_custom_call.1} parent=1 // pred_check
      _
    $region43: #{tpu_custom_call.1} parent=1 // pred_check_branch
      %93 = sbr.rel (0) target = $region45
    $region44: #{tpu_custom_call.1} parent=1 // pred_region
      %94 = dma.done [#allocation6], 1024
    $region45: #{tpu_custom_call.1} parent=1 // pred_fallthru
      _
    // Predicated region
    $region46: #{tpu_custom_call.1} parent=1 // pred_check
      _
    $region47: #{tpu_custom_call.1} parent=1 // pred_check_branch
      %96 = sbr.rel (0) target = $region49
    $region48: #{tpu_custom_call.1} parent=1 // pred_region
      %97 = dma.done [#allocation6], 2048
    $region49: #{tpu_custom_call.1} parent=1 // pred_fallthru
      _
    // Predicated region
    $region50: #{tpu_custom_call.1} parent=1 // pred_check
      _
    $region51: #{tpu_custom_call.1} parent=1 // pred_check_branch
      %99 = sbr.rel (0) target = $region53
    $region52: #{tpu_custom_call.1} parent=1 // pred_region
      %100 = dma.done [#allocation9], 2048
    $region53: #{tpu_custom_call.1} parent=1 // pred_fallthru
      _
    // Predicated region
    $region54: #{tpu_custom_call.1} parent=1 // pred_check
      _
    $region55: #{tpu_custom_call.1} parent=1 // pred_check_branch
      %102 = sbr.rel (0) target = $region57
    $region56: #{tpu_custom_call.1} parent=1 // pred_region
      %103 = dma.done [#allocation9], 4096
    $region57: #{tpu_custom_call.1} parent=1 // pred_fallthru
      _
    %v104 = vld [vmem:[#allocation2] sm:$0xff]
    %v105 = vld [vmem:[#allocation2 + $0x8] sm:$0xff]
    %v106 = vld [vmem:[#allocation2 + $0x10] sm:$0xff]
    %v107 = vld [vmem:[#allocation2 + $0x18] sm:$0xff]
    %v108 = vld [vmem:[#allocation5] sm:$0xff]
    %v109 = vld [vmem:[#allocation5 + $0x8] sm:$0xff]
    %v110 = vld [vmem:[#allocation5 + $0x10] sm:$0xff]
    %v111 = vld [vmem:[#allocation5 + $0x18] sm:$0xff]
    %v112 = vld [vmem:[#allocation5 + $0x20] sm:$0xff]
    %v113 = vld [vmem:[#allocation5 + $0x28] sm:$0xff]
    %v114 = vld [vmem:[#allocation5 + $0x30] sm:$0xff]
    %v115 = vld [vmem:[#allocation5 + $0x38] sm:$0xff]
    %v116 = vld [vmem:[%s2] sm:$0x1]
    %v118 = vlaneseq
    %v119 = vshrl.u32 %v118, 7
    %v120 = vsub.s32 0, %v119
    %v121 = vrot.slane %v116, %v120
    %vm123 = vcmask 523264
    %v125 = vsel %vm123, %v104, 0
    %v128 = vsel %vm123, %v105, 0
    %v131 = vsel %vm123, %v106, 0
    %v134 = vsel %vm123, %v107, 0
    %136 = vmatprep.subr.mxu0 0.0
    %137 = vmatpush1.msra.mxu0 %v108
    %138 = vmatprep.subr.mxu0 0.0
    %139 = vmatpush1.msra.mxu0 %v109
    %140 = vmatprep.subr.mxu0 0.0
    %141 = vmatpush1.msra.mxu0 %v110
    %142 = vmatprep.subr.mxu0 0.0
    %143 = vmatpush1.msra.mxu0 %v111
    %144 = vmatprep.subr.mxu0 0.0
    %145 = vmatpush1.msra.mxu0 %v112
    %146 = vmatprep.subr.mxu0 0.0
    %147 = vmatpush1.msra.mxu0 %v113
    %148 = vmatprep.subr.mxu0 0.0
    %149 = vmatpush1.msra.mxu0 %v114
    %150 = vmatprep.subr.mxu0 0.0
    %151 = vmatpush1.msra.mxu0 %v115
    %152 = vmatprep.subr.mxu0 0.0
    %153 = vmatpush1.msra.mxu0 0.0
    %154 = vmatprep.subr.mxu0 0.0
    %155 = vmatpush1.msra.mxu0 0.0
    %156 = vmatprep.subr.mxu0 0.0
    %157 = vmatpush1.msra.mxu0 0.0
    %158 = vmatprep.subr.mxu0 0.0
    %159 = vmatpush1.msra.mxu0 0.0
    %160 = vmatprep.subr.mxu0 0.0
    %161 = vmatpush1.msra.mxu0 0.0
    %162 = vmatprep.subr.mxu0 0.0
    %163 = vmatpush1.msra.mxu0 0.0
    %164 = vmatprep.subr.mxu0 0.0
    %165 = vmatpush1.msra.mxu0 0.0
    %166 = vmatprep.subr.mxu0 0.0
    %167 = vmatpush1.msra.mxu0 0.0
    %168 = vmatprep.subr.mxu0 0.0
    %169 = vmatpush1.msra.mxu0 0.0
    %170 = vmatprep.subr.mxu0 0.0
    %171 = vmatpush1.msra.mxu0 0.0
    %172 = vmatprep.subr.mxu0 0.0
    %173 = vmatpush1.msra.mxu0 0.0
    %174 = vmatprep.subr.mxu0 0.0
    %175 = vmatpush1.msra.mxu0 0.0
    %176 = vmatprep.subr.mxu0 0.0
    %177 = vmatpush1.msra.mxu0 0.0
    %178 = vmatprep.subr.mxu0 0.0
    %179 = vmatpush1.msra.mxu0 0.0
    %180 = vmatprep.subr.mxu0 0.0
    %181 = vmatpush1.msra.mxu0 0.0
    %182 = vmatprep.subr.mxu0 0.0
    %183 = vmatpush1.msra.mxu0 0.0
    %184 = vmatprep.subr.mxu0 0.0
    %185 = vmatpush1.msra.mxu0 0.0
    %186 = vmatprep.subr.mxu0 0.0
    %187 = vmatpush1.msra.mxu0 0.0
    %188 = vmatprep.subr.mxu0 0.0
    %189 = vmatpush1.msra.mxu0 0.0
    %190 = vmatprep.subr.mxu0 0.0
    %191 = vmatpush1.msra.mxu0 0.0
    %192 = vmatprep.subr.mxu0 0.0
    %193 = vmatpush1.msra.mxu0 0.0
    %194 = vmatprep.subr.mxu0 0.0
    %195 = vmatpush1.msra.mxu0 0.0
    %196 = vmatprep.subr.mxu0 0.0
    %197 = vmatpush1.msra.mxu0 0.0
    %198 = vmatprep.subr.mxu0 0.0
    %199 = vmatpush1.msra.mxu0 0.0
    %200 = vmatprep.mubr.f32.mxu0 0.0
    %201 = vmatmul.mubr.f32.gmra.mrb[0].mxu0 %v125
    %v202 = vpop.f32.mrb[0].mxu0
    %v203 = vadd.f32 %v121, %v202
    %v204 = vpop.f32.mrb[0].mxu0
    %205 = vmatprep.mubr.f32.mxu0 0.0
    %206 = vmatmul.mubr.f32.gmra.mrb[0].mxu0 %v128
    %v207 = vpop.f32.mrb[0].mxu0
    %v208 = vadd.f32 %v121, %v207
    %v209 = vpop.f32.mrb[0].mxu0
    %210 = vmatprep.mubr.f32.mxu0 0.0
    %211 = vmatmul.mubr.f32.gmra.mrb[0].mxu0 %v131
    %v212 = vpop.f32.mrb[0].mxu0
    %v213 = vadd.f32 %v121, %v212
    %v214 = vpop.f32.mrb[0].mxu0
    %215 = vmatprep.mubr.f32.mxu0 0.0
    %216 = vmatmul.mubr.f32.gmra.mrb[0].mxu0 %v134
    %v217 = vpop.f32.mrb[0].mxu0
    %v218 = vadd.f32 %v121, %v217
    %v219 = vpop.f32.mrb[0].mxu0
    %220 = vdwg.mxu0
    %v221 = vmax.f32 %v203, 0.0
    %v222 = vmax.f32 %v208, 0.0
    %v223 = vmax.f32 %v213, 0.0
    %v224 = vmax.f32 %v218, 0.0
    %v225 = vld [vmem:[#allocation7] sm:$0xff]
    %v226 = vld [vmem:[#allocation7 + $0x8] sm:$0xff]
    %v227 = vld [vmem:[#allocation7 + $0x10] sm:$0xff]
    %v228 = vld [vmem:[#allocation7 + $0x18] sm:$0xff]
    %v229 = vld [vmem:[#allocation7 + $0x20] sm:$0xff]
    %v230 = vld [vmem:[#allocation7 + $0x28] sm:$0xff]
    %v231 = vld [vmem:[#allocation7 + $0x30] sm:$0xff]
    %v232 = vld [vmem:[#allocation7 + $0x38] sm:$0xff]
    %v233 = vld [vmem:[#allocation7 + $0x40] sm:$0xff]
    %v234 = vld [vmem:[#allocation7 + $0x48] sm:$0xff]
    %v235 = vld [vmem:[#allocation7 + $0x50] sm:$0xff]
    %v236 = vld [vmem:[#allocation7 + $0x58] sm:$0xff]
    %v237 = vld [vmem:[#allocation7 + $0x60] sm:$0xff]
    %v238 = vld [vmem:[#allocation7 + $0x68] sm:$0xff]
    %v239 = vld [vmem:[#allocation7 + $0x70] sm:$0xff]
    %v240 = vld [vmem:[#allocation7 + $0x78] sm:$0xff]
    %v241 = vld [vmem:[%s4] sm:$0x1]
    %v243 = vlaneseq
    %v244 = vshrl.u32 %v243, 7
    %v245 = vsub.s32 0, %v244
    %v246 = vrot.slane %v241, %v245
    %248 = vmatprep.subr.mxu0 0.0
    %249 = vmatpush1.msra.mxu0 %v225
    %250 = vmatprep.subr.mxu0 0.0
    %251 = vmatpush1.msra.mxu0 %v226
    %252 = vmatprep.subr.mxu0 0.0
    %253 = vmatpush1.msra.mxu0 %v227
    %254 = vmatprep.subr.mxu0 0.0
    %255 = vmatpush1.msra.mxu0 %v228
    %256 = vmatprep.subr.mxu0 0.0
    %257 = vmatpush1.msra.mxu0 %v229
    %258 = vmatprep.subr.mxu0 0.0
    %259 = vmatpush1.msra.mxu0 %v230
    %260 = vmatprep.subr.mxu0 0.0
    %261 = vmatpush1.msra.mxu0 %v231
    %262 = vmatprep.subr.mxu0 0.0
    %263 = vmatpush1.msra.mxu0 %v232
    %264 = vmatprep.subr.mxu0 0.0
    %265 = vmatpush1.msra.mxu0 %v233
    %266 = vmatprep.subr.mxu0 0.0
    %267 = vmatpush1.msra.mxu0 %v234
    %268 = vmatprep.subr.mxu0 0.0
    %269 = vmatpush1.msra.mxu0 %v235
    %270 = vmatprep.subr.mxu0 0.0
    %271 = vmatpush1.msra.mxu0 %v236
    %272 = vmatprep.subr.mxu0 0.0
    %273 = vmatpush1.msra.mxu0 %v237
    %274 = vmatprep.subr.mxu0 0.0
    %275 = vmatpush1.msra.mxu0 %v238
    %276 = vmatprep.subr.mxu0 0.0
    %277 = vmatpush1.msra.mxu0 %v239
    %278 = vmatprep.subr.mxu0 0.0
    %279 = vmatpush1.msra.mxu0 %v240
    %280 = vmatprep.subr.mxu0 0.0
    %281 = vmatpush1.msra.mxu0 0.0
    %282 = vmatprep.subr.mxu0 0.0
    %283 = vmatpush1.msra.mxu0 0.0
    %284 = vmatprep.subr.mxu0 0.0
    %285 = vmatpush1.msra.mxu0 0.0
    %286 = vmatprep.subr.mxu0 0.0
    %287 = vmatpush1.msra.mxu0 0.0
    %288 = vmatprep.subr.mxu0 0.0
    %289 = vmatpush1.msra.mxu0 0.0
    %290 = vmatprep.subr.mxu0 0.0
    %291 = vmatpush1.msra.mxu0 0.0
    %292 = vmatprep.subr.mxu0 0.0
    %293 = vmatpush1.msra.mxu0 0.0
    %294 = vmatprep.subr.mxu0 0.0
    %295 = vmatpush1.msra.mxu0 0.0
    %296 = vmatprep.subr.mxu0 0.0
    %297 = vmatpush1.msra.mxu0 0.0
    %298 = vmatprep.subr.mxu0 0.0
    %299 = vmatpush1.msra.mxu0 0.0
    %300 = vmatprep.subr.mxu0 0.0
    %301 = vmatpush1.msra.mxu0 0.0
    %302 = vmatprep.subr.mxu0 0.0
    %303 = vmatpush1.msra.mxu0 0.0
    %304 = vmatprep.subr.mxu0 0.0
    %305 = vmatpush1.msra.mxu0 0.0
    %306 = vmatprep.subr.mxu0 0.0
    %307 = vmatpush1.msra.mxu0 0.0
    %308 = vmatprep.subr.mxu0 0.0
    %309 = vmatpush1.msra.mxu0 0.0
    %310 = vmatprep.subr.mxu0 0.0
    %311 = vmatpush1.msra.mxu0 0.0
    %312 = vmatprep.mubr.f32.mxu0 0.0
    %313 = vmatmul.mubr.f32.gmra.mrb[0].mxu0 %v221
    %v314 = vpop.f32.mrb[0].mxu0
    %v315 = vadd.f32 %v246, %v314
    %v316 = vpop.f32.mrb[0].mxu0
    %317 = vmatprep.mubr.f32.mxu0 0.0
    %318 = vmatmul.mubr.f32.gmra.mrb[0].mxu0 %v222
    %v319 = vpop.f32.mrb[0].mxu0
    %v320 = vadd.f32 %v246, %v319
    %v321 = vpop.f32.mrb[0].mxu0
    %322 = vmatprep.mubr.f32.mxu0 0.0
    %323 = vmatmul.mubr.f32.gmra.mrb[0].mxu0 %v223
    %v324 = vpop.f32.mrb[0].mxu0
    %v325 = vadd.f32 %v246, %v324
    %v326 = vpop.f32.mrb[0].mxu0
    %327 = vmatprep.mubr.f32.mxu0 0.0
    %328 = vmatmul.mubr.f32.gmra.mrb[0].mxu0 %v224
    %v329 = vpop.f32.mrb[0].mxu0
    %v330 = vadd.f32 %v246, %v329
    %v331 = vpop.f32.mrb[0].mxu0
    %332 = vdwg.mxu0
    %v333 = vmax.f32 %v315, 0.0
    %v334 = vmax.f32 %v320, 0.0
    %v335 = vmax.f32 %v325, 0.0
    %v336 = vmax.f32 %v330, 0.0
    %v337 = vld [vmem:[#allocation8] sm:$0xff]
    %v338 = vld [vmem:[#allocation8 + $0x8] sm:$0xff]
    %v339 = vld [vmem:[#allocation8 + $0x10] sm:$0xff]
    %v340 = vld [vmem:[#allocation8 + $0x18] sm:$0xff]
    %v341 = vld [vmem:[#allocation8 + $0x20] sm:$0xff]
    %v342 = vld [vmem:[#allocation8 + $0x28] sm:$0xff]
    %v343 = vld [vmem:[#allocation8 + $0x30] sm:$0xff]
    %v344 = vld [vmem:[#allocation8 + $0x38] sm:$0xff]
    %v345 = vld [vmem:[#allocation8 + $0x40] sm:$0xff]
    %v346 = vld [vmem:[#allocation8 + $0x48] sm:$0xff]
    %v347 = vld [vmem:[#allocation8 + $0x50] sm:$0xff]
    %v348 = vld [vmem:[#allocation8 + $0x58] sm:$0xff]
    %v349 = vld [vmem:[#allocation8 + $0x60] sm:$0xff]
    %v350 = vld [vmem:[#allocation8 + $0x68] sm:$0xff]
    %v351 = vld [vmem:[#allocation8 + $0x70] sm:$0xff]
    %v352 = vld [vmem:[#allocation8 + $0x78] sm:$0xff]
    %v353 = vld [vmem:[%s6] sm:$0x1]
    %v355 = vlaneseq
    %v356 = vshrl.u32 %v355, 7
    %v357 = vsub.s32 0, %v356
    %v358 = vrot.slane %v353, %v357
    %360 = vmatprep.subr.mxu0 0.0
    %361 = vmatpush1.msra.mxu0 %v337
    %362 = vmatprep.subr.mxu0 0.0
    %363 = vmatpush1.msra.mxu0 %v338
    %364 = vmatprep.subr.mxu0 0.0
    %365 = vmatpush1.msra.mxu0 %v339
    %366 = vmatprep.subr.mxu0 0.0
    %367 = vmatpush1.msra.mxu0 %v340
    %368 = vmatprep.subr.mxu0 0.0
    %369 = vmatpush1.msra.mxu0 %v341
    %370 = vmatprep.subr.mxu0 0.0
    %371 = vmatpush1.msra.mxu0 %v342
    %372 = vmatprep.subr.mxu0 0.0
    %373 = vmatpush1.msra.mxu0 %v343
    %374 = vmatprep.subr.mxu0 0.0
    %375 = vmatpush1.msra.mxu0 %v344
    %376 = vmatprep.subr.mxu0 0.0
    %377 = vmatpush1.msra.mxu0 %v345
    %378 = vmatprep.subr.mxu0 0.0
    %379 = vmatpush1.msra.mxu0 %v346
    %380 = vmatprep.subr.mxu0 0.0
    %381 = vmatpush1.msra.mxu0 %v347
    %382 = vmatprep.subr.mxu0 0.0
    %383 = vmatpush1.msra.mxu0 %v348
    %384 = vmatprep.subr.mxu0 0.0
    %385 = vmatpush1.msra.mxu0 %v349
    %386 = vmatprep.subr.mxu0 0.0
    %387 = vmatpush1.msra.mxu0 %v350
    %388 = vmatprep.subr.mxu0 0.0
    %389 = vmatpush1.msra.mxu0 %v351
    %390 = vmatprep.subr.mxu0 0.0
    %391 = vmatpush1.msra.mxu0 %v352
    %392 = vmatprep.subr.mxu0 0.0
    %393 = vmatpush1.msra.mxu0 0.0
    %394 = vmatprep.subr.mxu0 0.0
    %395 = vmatpush1.msra.mxu0 0.0
    %396 = vmatprep.subr.mxu0 0.0
    %397 = vmatpush1.msra.mxu0 0.0
    %398 = vmatprep.subr.mxu0 0.0
    %399 = vmatpush1.msra.mxu0 0.0
    %400 = vmatprep.subr.mxu0 0.0
    %401 = vmatpush1.msra.mxu0 0.0
    %402 = vmatprep.subr.mxu0 0.0
    %403 = vmatpush1.msra.mxu0 0.0
    %404 = vmatprep.subr.mxu0 0.0
    %405 = vmatpush1.msra.mxu0 0.0
    %406 = vmatprep.subr.mxu0 0.0
    %407 = vmatpush1.msra.mxu0 0.0
    %408 = vmatprep.subr.mxu0 0.0
    %409 = vmatpush1.msra.mxu0 0.0
    %410 = vmatprep.subr.mxu0 0.0
    %411 = vmatpush1.msra.mxu0 0.0
    %412 = vmatprep.subr.mxu0 0.0
    %413 = vmatpush1.msra.mxu0 0.0
    %414 = vmatprep.subr.mxu0 0.0
    %415 = vmatpush1.msra.mxu0 0.0
    %416 = vmatprep.subr.mxu0 0.0
    %417 = vmatpush1.msra.mxu0 0.0
    %418 = vmatprep.subr.mxu0 0.0
    %419 = vmatpush1.msra.mxu0 0.0
    %420 = vmatprep.subr.mxu0 0.0
    %421 = vmatpush1.msra.mxu0 0.0
    %422 = vmatprep.subr.mxu0 0.0
    %423 = vmatpush1.msra.mxu0 0.0
    %424 = vmatprep.mubr.f32.mxu0 0.0
    %425 = vmatmul.mubr.f32.gmra.mrb[0].mxu0 %v333
    %v426 = vpop.f32.mrb[0].mxu0
    %v427 = vadd.f32 %v358, %v426
    %v428 = vpop.f32.mrb[0].mxu0
    %429 = vmatprep.mubr.f32.mxu0 0.0
    %430 = vmatmul.mubr.f32.gmra.mrb[0].mxu0 %v334
    %v431 = vpop.f32.mrb[0].mxu0
    %v432 = vadd.f32 %v358, %v431
    %v433 = vpop.f32.mrb[0].mxu0
    %434 = vmatprep.mubr.f32.mxu0 0.0
    %435 = vmatmul.mubr.f32.gmra.mrb[0].mxu0 %v335
    %v436 = vpop.f32.mrb[0].mxu0
    %v437 = vadd.f32 %v358, %v436
    %v438 = vpop.f32.mrb[0].mxu0
    %439 = vmatprep.mubr.f32.mxu0 0.0
    %440 = vmatmul.mubr.f32.gmra.mrb[0].mxu0 %v336
    %v441 = vpop.f32.mrb[0].mxu0
    %v442 = vadd.f32 %v358, %v441
    %v443 = vpop.f32.mrb[0].mxu0
    %444 = vdwg.mxu0
    %445 = vmax.xlane.f32.xlu0 %v427
    %v446 = vpop.xlane.xlu0 %445
    %447 = vmax.xlane.f32.xlu0 %v432
    %v448 = vpop.xlane.xlu0 %447
    %449 = vmax.xlane.f32.xlu0 %v437
    %v450 = vpop.xlane.xlu0 %449
    %451 = vmax.xlane.f32.xlu0 %v442
    %v452 = vpop.xlane.xlu0 %451
    %v453 = vsub.f32 %v427, %v446
    %v454 = vsub.f32 %v432, %v448
    %v455 = vsub.f32 %v437, %v450
    %v456 = vsub.f32 %v442, %v452
    %v457 = vmul.f32 %v453, 1.442695
    %v458 = vpow.pop %v457
    %v459 = vmul.f32 %v454, 1.442695
    %v460 = vpow.pop %v459
    %v461 = vmul.f32 %v455, 1.442695
    %v462 = vpow.pop %v461
    %v463 = vmul.f32 %v456, 1.442695
    %v464 = vpow.pop %v463
    %465 = vadd.xlane.f32.xlu0 %v458
    %v466 = vpop.xlane.xlu0 %465
    %467 = vadd.xlane.f32.xlu0 %v460
    %v468 = vpop.xlane.xlu0 %467
    %469 = vadd.xlane.f32.xlu0 %v462
    %v470 = vpop.xlane.xlu0 %469
    %471 = vadd.xlane.f32.xlu0 %v464
    %v472 = vpop.xlane.xlu0 %471
    %v473 = vrcp.pop %v466
    %v474 = vrcp.pop %v468
    %v475 = vrcp.pop %v470
    %v476 = vrcp.pop %v472
    %v477 = vmul.f32 %v458, %v473
    %v478 = vmul.f32 %v460, %v474
    %v479 = vmul.f32 %v462, %v475
    %v480 = vmul.f32 %v464, %v476
    %481 = vst [vmem:[#allocation12] sm:$0xff] %v477
    %482 = vst [vmem:[#allocation12 + $0x8] sm:$0xff] %v478
    %483 = vst [vmem:[#allocation12 + $0x10] sm:$0xff] %v479
    %484 = vst [vmem:[#allocation12 + $0x18] sm:$0xff] %v480
    %v485 = vld [vmem:[#allocation10] sm:$0xff]
    %v486 = vld [vmem:[#allocation10 + $0x8] sm:$0xff]
    %v487 = vld [vmem:[#allocation10 + $0x10] sm:$0xff]
    %v488 = vld [vmem:[#allocation10 + $0x18] sm:$0xff]
    %v489 = vld [vmem:[#allocation10 + $0x20] sm:$0xff]
    %v490 = vld [vmem:[#allocation10 + $0x28] sm:$0xff]
    %v491 = vld [vmem:[#allocation10 + $0x30] sm:$0xff]
    %v492 = vld [vmem:[#allocation10 + $0x38] sm:$0xff]
    %v493 = vld [vmem:[#allocation10 + $0x40] sm:$0xff]
    %v494 = vld [vmem:[#allocation10 + $0x48] sm:$0xff]
    %v495 = vld [vmem:[#allocation10 + $0x50] sm:$0xff]
    %v496 = vld [vmem:[#allocation10 + $0x58] sm:$0xff]
    %v497 = vld [vmem:[#allocation10 + $0x60] sm:$0xff]
    %v498 = vld [vmem:[#allocation10 + $0x68] sm:$0xff]
    %v499 = vld [vmem:[#allocation10 + $0x70] sm:$0xff]
    %v500 = vld [vmem:[#allocation10 + $0x78] sm:$0xff]
    %v501 = vld [vmem:[#allocation10 + $0x80] sm:$0xff]
    %v502 = vld [vmem:[#allocation10 + $0x88] sm:$0xff]
    %v503 = vld [vmem:[#allocation10 + $0x90] sm:$0xff]
    %v504 = vld [vmem:[#allocation10 + $0x98] sm:$0xff]
    %v505 = vld [vmem:[#allocation10 + $0xa0] sm:$0xff]
    %v506 = vld [vmem:[#allocation10 + $0xa8] sm:$0xff]
    %v507 = vld [vmem:[#allocation10 + $0xb0] sm:$0xff]
    %v508 = vld [vmem:[#allocation10 + $0xb8] sm:$0xff]
    %v509 = vld [vmem:[#allocation10 + $0xc0] sm:$0xff]
    %v510 = vld [vmem:[#allocation10 + $0xc8] sm:$0xff]
    %v511 = vld [vmem:[#allocation10 + $0xd0] sm:$0xff]
    %v512 = vld [vmem:[#allocation10 + $0xd8] sm:$0xff]
    %v513 = vld [vmem:[#allocation10 + $0xe0] sm:$0xff]
    %v514 = vld [vmem:[#allocation10 + $0xe8] sm:$0xff]
    %v515 = vld [vmem:[#allocation10 + $0xf0] sm:$0xff]
    %v516 = vld [vmem:[#allocation10 + $0xf8] sm:$0xff]
    %v517 = vld [vmem:[%s8] sm:$0xf]
    %v519 = vlaneseq
    %v520 = vshrl.u32 %v519, 7
    %v521 = vsub.s32 0, %v520
    %v522 = vrot.slane %v517, %v521
    %v523 = vlaneseq
    %v524 = vshrl.u32 %v523, 7
    %v525 = vsub.s32 1, %v524
    %v526 = vrot.slane %v517, %v525
    %v527 = vlaneseq
    %v528 = vshrl.u32 %v527, 7
    %v529 = vsub.s32 2, %v528
    %v530 = vrot.slane %v517, %v529
    %v531 = vlaneseq
    %v532 = vshrl.u32 %v531, 7
    %v533 = vsub.s32 3, %v532
    %v534 = vrot.slane %v517, %v533
    %539 = vmatprep.subr.mxu0 %v486
    %540 = vmatpush1.msra.mxu0 %v485
    %541 = vmatprep.subr.mxu0 %v490
    %542 = vmatpush1.msra.mxu0 %v489
    %543 = vmatprep.subr.mxu0 %v494
    %544 = vmatpush1.msra.mxu0 %v493
    %545 = vmatprep.subr.mxu0 %v498
    %546 = vmatpush1.msra.mxu0 %v497
    %547 = vmatprep.subr.mxu0 %v502
    %548 = vmatpush1.msra.mxu0 %v501
    %549 = vmatprep.subr.mxu0 %v506
    %550 = vmatpush1.msra.mxu0 %v505
    %551 = vmatprep.subr.mxu0 %v510
    %552 = vmatpush1.msra.mxu0 %v509
    %553 = vmatprep.subr.mxu0 %v514
    %554 = vmatpush1.msra.mxu0 %v513
    %555 = vmatprep.subr.mxu0 0.0
    %556 = vmatpush1.msra.mxu0 0.0
    %557 = vmatprep.subr.mxu0 0.0
    %558 = vmatpush1.msra.mxu0 0.0
    %559 = vmatprep.subr.mxu0 0.0
    %560 = vmatpush1.msra.mxu0 0.0
    %561 = vmatprep.subr.mxu0 0.0
    %562 = vmatpush1.msra.mxu0 0.0
    %563 = vmatprep.subr.mxu0 0.0
    %564 = vmatpush1.msra.mxu0 0.0
    %565 = vmatprep.subr.mxu0 0.0
    %566 = vmatpush1.msra.mxu0 0.0
    %567 = vmatprep.subr.mxu0 0.0
    %568 = vmatpush1.msra.mxu0 0.0
    %569 = vmatprep.subr.mxu0 0.0
    %570 = vmatpush1.msra.mxu0 0.0
    %571 = vmatprep.subr.mxu0 0.0
    %572 = vmatpush1.msra.mxu0 0.0
    %573 = vmatprep.subr.mxu0 0.0
    %574 = vmatpush1.msra.mxu0 0.0
    %575 = vmatprep.subr.mxu0 0.0
    %576 = vmatpush1.msra.mxu0 0.0
    %577 = vmatprep.subr.mxu0 0.0
    %578 = vmatpush1.msra.mxu0 0.0
    %579 = vmatprep.subr.mxu0 0.0
    %580 = vmatpush1.msra.mxu0 0.0
    %581 = vmatprep.subr.mxu0 0.0
    %582 = vmatpush1.msra.mxu0 0.0
    %583 = vmatprep.subr.mxu0 0.0
    %584 = vmatpush1.msra.mxu0 0.0
    %585 = vmatprep.subr.mxu0 0.0
    %586 = vmatpush1.msra.mxu0 0.0
    %587 = vmatprep.subr.mxu0 0.0
    %588 = vmatpush1.msra.mxu0 0.0
    %589 = vmatprep.subr.mxu0 0.0
    %590 = vmatpush1.msra.mxu0 0.0
    %591 = vmatprep.subr.mxu0 0.0
    %592 = vmatpush1.msra.mxu0 0.0
    %593 = vmatprep.subr.mxu0 0.0
    %594 = vmatpush1.msra.mxu0 0.0
    %595 = vmatprep.subr.mxu0 0.0
    %596 = vmatpush1.msra.mxu0 0.0
    %597 = vmatprep.subr.mxu0 0.0
    %598 = vmatpush1.msra.mxu0 0.0
    %599 = vmatprep.subr.mxu0 0.0
    %600 = vmatpush1.msra.mxu0 0.0
    %601 = vmatprep.subr.mxu0 0.0
    %602 = vmatpush1.msra.mxu0 0.0
    %603 = vmatprep.mubr.f32.mxu0 0.0
    %604 = vmatmul.mubr.f32.gmra.mrb[0].mxu0 %v125
    %v605 = vpop.f32.mrb[0].mxu0
    %v606 = vadd.f32 %v522, %v605
    %v607 = vpop.f32.mrb[0].mxu0
    %v608 = vadd.f32 %v526, %v607
    %609 = vmatprep.mubr.f32.mxu0 0.0
    %610 = vmatmul.mubr.f32.gmra.mrb[0].mxu0 %v128
    %v611 = vpop.f32.mrb[0].mxu0
    %v612 = vadd.f32 %v522, %v611
    %v613 = vpop.f32.mrb[0].mxu0
    %v614 = vadd.f32 %v526, %v613
    %615 = vmatprep.mubr.f32.mxu0 0.0
    %616 = vmatmul.mubr.f32.gmra.mrb[0].mxu0 %v131
    %v617 = vpop.f32.mrb[0].mxu0
    %v618 = vadd.f32 %v522, %v617
    %v619 = vpop.f32.mrb[0].mxu0
    %v620 = vadd.f32 %v526, %v619
    %621 = vmatprep.mubr.f32.mxu0 0.0
    %622 = vmatmul.mubr.f32.gmra.mrb[0].mxu0 %v134
    %v623 = vpop.f32.mrb[0].mxu0
    %v624 = vadd.f32 %v522, %v623
    %v625 = vpop.f32.mrb[0].mxu0
    %v626 = vadd.f32 %v526, %v625
    %627 = vdwg.mxu0
    %628 = vmatprep.subr.mxu0 %v488
    %629 = vmatpush1.msra.mxu0 %v487
    %630 = vmatprep.subr.mxu0 %v492
    %631 = vmatpush1.msra.mxu0 %v491
    %632 = vmatprep.subr.mxu0 %v496
    %633 = vmatpush1.msra.mxu0 %v495
    %634 = vmatprep.subr.mxu0 %v500
    %635 = vmatpush1.msra.mxu0 %v499
    %636 = vmatprep.subr.mxu0 %v504
    %637 = vmatpush1.msra.mxu0 %v503
    %638 = vmatprep.subr.mxu0 %v508
    %639 = vmatpush1.msra.mxu0 %v507
    %640 = vmatprep.subr.mxu0 %v512
    %641 = vmatpush1.msra.mxu0 %v511
    %642 = vmatprep.subr.mxu0 %v516
    %643 = vmatpush1.msra.mxu0 %v515
    %644 = vmatprep.subr.mxu0 0.0
    %645 = vmatpush1.msra.mxu0 0.0
    %646 = vmatprep.subr.mxu0 0.0
    %647 = vmatpush1.msra.mxu0 0.0
    %648 = vmatprep.subr.mxu0 0.0
    %649 = vmatpush1.msra.mxu0 0.0
    %650 = vmatprep.subr.mxu0 0.0
    %651 = vmatpush1.msra.mxu0 0.0
    %652 = vmatprep.subr.mxu0 0.0
    %653 = vmatpush1.msra.mxu0 0.0
    %654 = vmatprep.subr.mxu0 0.0
    %655 = vmatpush1.msra.mxu0 0.0
    %656 = vmatprep.subr.mxu0 0.0
    %657 = vmatpush1.msra.mxu0 0.0
    %658 = vmatprep.subr.mxu0 0.0
    %659 = vmatpush1.msra.mxu0 0.0
    %660 = vmatprep.subr.mxu0 0.0
    %661 = vmatpush1.msra.mxu0 0.0
    %662 = vmatprep.subr.mxu0 0.0
    %663 = vmatpush1.msra.mxu0 0.0
    %664 = vmatprep.subr.mxu0 0.0
    %665 = vmatpush1.msra.mxu0 0.0
    %666 = vmatprep.subr.mxu0 0.0
    %667 = vmatpush1.msra.mxu0 0.0
    %668 = vmatprep.subr.mxu0 0.0
    %669 = vmatpush1.msra.mxu0 0.0
    %670 = vmatprep.subr.mxu0 0.0
    %671 = vmatpush1.msra.mxu0 0.0
    %672 = vmatprep.subr.mxu0 0.0
    %673 = vmatpush1.msra.mxu0 0.0
    %674 = vmatprep.subr.mxu0 0.0
    %675 = vmatpush1.msra.mxu0 0.0
    %676 = vmatprep.subr.mxu0 0.0
    %677 = vmatpush1.msra.mxu0 0.0
    %678 = vmatprep.subr.mxu0 0.0
    %679 = vmatpush1.msra.mxu0 0.0
    %680 = vmatprep.subr.mxu0 0.0
    %681 = vmatpush1.msra.mxu0 0.0
    %682 = vmatprep.subr.mxu0 0.0
    %683 = vmatpush1.msra.mxu0 0.0
    %684 = vmatprep.subr.mxu0 0.0
    %685 = vmatpush1.msra.mxu0 0.0
    %686 = vmatprep.subr.mxu0 0.0
    %687 = vmatpush1.msra.mxu0 0.0
    %688 = vmatprep.subr.mxu0 0.0
    %689 = vmatpush1.msra.mxu0 0.0
    %690 = vmatprep.subr.mxu0 0.0
    %691 = vmatpush1.msra.mxu0 0.0
    %692 = vmatprep.mubr.f32.mxu0 0.0
    %693 = vmatmul.mubr.f32.gmra.mrb[0].mxu0 %v125
    %v694 = vpop.f32.mrb[0].mxu0
    %v695 = vadd.f32 %v530, %v694
    %v696 = vpop.f32.mrb[0].mxu0
    %v697 = vadd.f32 %v534, %v696
    %698 = vmatprep.mubr.f32.mxu0 0.0
    %699 = vmatmul.mubr.f32.gmra.mrb[0].mxu0 %v128
    %v700 = vpop.f32.mrb[0].mxu0
    %v701 = vadd.f32 %v530, %v700
    %v702 = vpop.f32.mrb[0].mxu0
    %v703 = vadd.f32 %v534, %v702
    %704 = vmatprep.mubr.f32.mxu0 0.0
    %705 = vmatmul.mubr.f32.gmra.mrb[0].mxu0 %v131
    %v706 = vpop.f32.mrb[0].mxu0
    %v707 = vadd.f32 %v530, %v706
    %v708 = vpop.f32.mrb[0].mxu0
    %v709 = vadd.f32 %v534, %v708
    %710 = vmatprep.mubr.f32.mxu0 0.0
    %711 = vmatmul.mubr.f32.gmra.mrb[0].mxu0 %v134
    %v712 = vpop.f32.mrb[0].mxu0
    %v713 = vadd.f32 %v530, %v712
    %v714 = vpop.f32.mrb[0].mxu0
    %v715 = vadd.f32 %v534, %v714
    %716 = vdwg.mxu0
    %v717 = vmax.f32 %v606, 0.0
    %v718 = vmax.f32 %v608, 0.0
    %v719 = vmax.f32 %v695, 0.0
    %v720 = vmax.f32 %v697, 0.0
    %v721 = vmax.f32 %v612, 0.0
    %v722 = vmax.f32 %v614, 0.0
    %v723 = vmax.f32 %v701, 0.0
    %v724 = vmax.f32 %v703, 0.0
    %v725 = vmax.f32 %v618, 0.0
    %v726 = vmax.f32 %v620, 0.0
    %v727 = vmax.f32 %v707, 0.0
    %v728 = vmax.f32 %v709, 0.0
    %v729 = vmax.f32 %v624, 0.0
    %v730 = vmax.f32 %v626, 0.0
    %v731 = vmax.f32 %v713, 0.0
    %v732 = vmax.f32 %v715, 0.0
    %734 = vset.pattern.permute.xlu0 0
    %735 = vperm.xlu0 %734, %v477
    %v736 = vpop.permute.xlu0 %735
    %739 = vset.pattern.permute.xlu0 0
    %740 = vperm.xlu0 %739, %v478
    %v741 = vpop.permute.xlu0 %740
    %744 = vset.pattern.permute.xlu0 0
    %745 = vperm.xlu0 %744, %v479
    %v746 = vpop.permute.xlu0 %745
    %749 = vset.pattern.permute.xlu0 0
    %750 = vperm.xlu0 %749, %v480
    %v751 = vpop.permute.xlu0 %750
    %v753 = vmul.f32 %v736, %v717
    %v754 = vmul.f32 %v741, %v721
    %v755 = vmul.f32 %v746, %v725
    %v756 = vmul.f32 %v751, %v729
    %757 = vset.pattern.permute.xlu0 1
    %758 = vperm.xlu0 %757, %v477
    %v759 = vpop.permute.xlu0 %758
    %761 = vset.pattern.permute.xlu0 1
    %762 = vperm.xlu0 %761, %v478
    %v763 = vpop.permute.xlu0 %762
    %765 = vset.pattern.permute.xlu0 1
    %766 = vperm.xlu0 %765, %v479
    %v767 = vpop.permute.xlu0 %766
    %769 = vset.pattern.permute.xlu0 1
    %770 = vperm.xlu0 %769, %v480
    %v771 = vpop.permute.xlu0 %770
    %v773 = vmul.f32 %v759, %v718
    %v774 = vmul.f32 %v763, %v722
    %v775 = vmul.f32 %v767, %v726
    %v776 = vmul.f32 %v771, %v730
    %v777 = vadd.f32 %v753, %v773
    %v778 = vadd.f32 %v754, %v774
    %v779 = vadd.f32 %v755, %v775
    %v780 = vadd.f32 %v756, %v776
    %781 = vset.pattern.permute.xlu0 2
    %782 = vperm.xlu0 %781, %v477
    %v783 = vpop.permute.xlu0 %782
    %785 = vset.pattern.permute.xlu0 2
    %786 = vperm.xlu0 %785, %v478
    %v787 = vpop.permute.xlu0 %786
    %789 = vset.pattern.permute.xlu0 2
    %790 = vperm.xlu0 %789, %v479
    %v791 = vpop.permute.xlu0 %790
    %793 = vset.pattern.permute.xlu0 2
    %794 = vperm.xlu0 %793, %v480
    %v795 = vpop.permute.xlu0 %794
    %v797 = vmul.f32 %v783, %v719
    %v798 = vmul.f32 %v787, %v723
    %v799 = vmul.f32 %v791, %v727
    %v800 = vmul.f32 %v795, %v731
    %v801 = vadd.f32 %v777, %v797
    %v802 = vadd.f32 %v778, %v798
    %v803 = vadd.f32 %v779, %v799
    %v804 = vadd.f32 %v780, %v800
    %805 = vset.pattern.permute.xlu0 3
    %806 = vperm.xlu0 %805, %v477
    %v807 = vpop.permute.xlu0 %806
    %809 = vset.pattern.permute.xlu0 3
    %810 = vperm.xlu0 %809, %v478
    %v811 = vpop.permute.xlu0 %810
    %813 = vset.pattern.permute.xlu0 3
    %814 = vperm.xlu0 %813, %v479
    %v815 = vpop.permute.xlu0 %814
    %817 = vset.pattern.permute.xlu0 3
    %818 = vperm.xlu0 %817, %v480
    %v819 = vpop.permute.xlu0 %818
    %v821 = vmul.f32 %v807, %v720
    %v822 = vmul.f32 %v811, %v724
    %v823 = vmul.f32 %v815, %v728
    %v824 = vmul.f32 %v819, %v732
    %v825 = vadd.f32 %v801, %v821
    %v826 = vadd.f32 %v802, %v822
    %v827 = vadd.f32 %v803, %v823
    %v828 = vadd.f32 %v804, %v824
    %829 = vst [vmem:[#allocation11] sm:$0xff] %v825
    %830 = vst [vmem:[#allocation11 + $0x8] sm:$0xff] %v826
    %831 = vst [vmem:[#allocation11 + $0x10] sm:$0xff] %v827
    %832 = vst [vmem:[#allocation11 + $0x18] sm:$0xff] %v828
    // Predicated region
    $region58: #{tpu_custom_call.1} parent=1 // pred_check
      _
    $region59: #{tpu_custom_call.1} parent=1 // pred_check_branch
      %834 = sbr.rel (0) target = $region61
    $region60: #{tpu_custom_call.1} parent=1 // pred_region
      %s836 = ssub.s32 512, 512
      %837 = vsyncadd [#allocation4], %s836
      %s838 = sshll.u32 [#allocation11], 4
      %s839 = int_to_ptr.vmem [resolvable:$true] %s838
      %844 = dma.vmem_to_hbm [thread:$0]  %s839, 512, %s9, [#allocation4], 128, 128, 8
    $region61: #{tpu_custom_call.1} parent=1 // pred_fallthru
      _
    // Predicated region
    $region62: #{tpu_custom_call.1} parent=1 // pred_check
      _
    $region63: #{tpu_custom_call.1} parent=1 // pred_check_branch
      %846 = sbr.rel (0) target = $region65
    $region64: #{tpu_custom_call.1} parent=1 // pred_region
      %s848 = ssub.s32 512, 512
      %849 = vsyncadd [#allocation13], %s848
      %s850 = sshll.u32 [#allocation12], 4
      %s851 = int_to_ptr.vmem [resolvable:$true] %s850
      %856 = dma.vmem_to_hbm [thread:$0]  %s851, 512, %s10, [#allocation13], 128, 128, 8
    $region65: #{tpu_custom_call.1} parent=1 // pred_fallthru
      _
    // Predicated region
    $region66: #{tpu_custom_call.1} parent=1 // pred_check
      _
    $region67: #{tpu_custom_call.1} parent=1 // pred_check_branch
      %858 = sbr.rel (0) target = $region69
    $region68: #{tpu_custom_call.1} parent=1 // pred_region
      %859 = dma.done [#allocation4], 512
    $region69: #{tpu_custom_call.1} parent=1 // pred_fallthru
      _
    // Predicated region
    $region70: #{tpu_custom_call.1} parent=1 // pred_check
      _
    $region71: #{tpu_custom_call.1} parent=1 // pred_check_branch
      %861 = sbr.rel (0) target = $region73
    $region72: #{tpu_custom_call.1} parent=1 // pred_region
      %862 = dma.done [#allocation13], 512
    $region73: #{tpu_custom_call.1} parent=1 // pred_fallthru
      _
    %863 = vsyncpa [#allocation3], 1
    %864 = vsyncpa [#allocation6], 1
    %865 = vsyncpa [#allocation9], 1
    %866 = vsyncpa [#allocation4], 1
    %867 = vsyncpa [#allocation13], 1

</llo_original>
